<compile_context>
chip_gen: v7x
topology: tpu7x:2x2x1
jax: 0.10.0
libtpu: 0.0.40
codegen_flags: <defaults>
</compile_context>

<pallas_src>
import jax
import jax.numpy as jnp
from jax.experimental import pallas as pl
from jax.experimental.pallas import tpu as pltpu

# ----- config consistent with the module's forward (small stand-in sizes) -----
B = 2                      # batch size == number of graph nodes
C = 3                      # RGB images
IMG = 16                   # spatial size
KH = KW = 3                # conv kernel of the stand-in stem
F = 64                     # stand-in for convnext_base.classifier[2].in_features
HEADS = 3                  # n_heads
D = 8                      # embedding_size (per head)
NUM_CLASSES = 5
HW = IMG * IMG
CK = C * KH * KW           # 27
CHW = C * IMG * IMG        # 768
BHW = B * HW               # 512
PK = 128                   # lane-dense padded K for the stem matmul
HBW = 32                   # padded width of [Wh | Wh@a_dst] (>= HEADS*D + HEADS)
LN_EPS = 1e-6
NEG_SLOPE = 0.2            # PyG GATConv default LeakyReLU slope

# rows inside the packed f32 parameter slab
ROW_BC, ROW_LNG, ROW_LNB, ROW_CE, ROW_BO, ROW_WSRC = 64, 65, 66, 67, 68, 72
GNN_ROWS, GNN_COLS = 80, 128


# ---------------------------------------------------------------------------
# Single fused kernel: stem -> pooled feats -> edge_attr -> GAT -> classifier
# ---------------------------------------------------------------------------
def _fused_kernel(stem_ref, img_ref, gnn_ref, o_ref):
    # --- stem: conv(3x3, pad 1) as one lane-dense bf16 im2col matmul ---
    patches = stem_ref[0:BHW, :]                           # (512, 128) bf16
    wc = stem_ref[BHW:BHW + PK, 0:F]                       # (128, 64)  bf16
    y = jnp.dot(patches, wc, preferred_element_type=jnp.float32)     # (512, 64) f32
    bc = gnn_ref[ROW_BC:ROW_BC + 1, 0:F]
    y = jnp.maximum(y + bc, 0.0)                           # bias + ReLU (f32 VPU)

    # AdaptiveAvgPool2d((1,1)): sublane reduction keeps the MXU chain short.
    feats = jnp.mean(y.reshape(B, HW, F), axis=1)          # (B, F)

    # classifier[0] LayerNorm2d over channels (eps=1e-6), then Flatten (no-op).
    ln_g = gnn_ref[ROW_LNG:ROW_LNG + 1, 0:F]
    ln_b = gnn_ref[ROW_LNB:ROW_LNB + 1, 0:F]
    mu = jnp.mean(feats, axis=-1, keepdims=True)
    var = jnp.mean(jnp.square(feats - mu), axis=-1, keepdims=True)
    feats = (feats - mu) * jax.lax.rsqrt(var + LN_EPS) * ln_g + ln_b

    # --- get_edge_attr: dense pairwise mean|x_i - x_j| (fully connected, self loops) ---
    # TODO(synk): the (B,B,CHW) broadcast is fine at B=2; tile it per row (or move
    #   it to the XLA wrapper) before scaling B on v7x (64 MiB VMEM).
    img = img_ref[...]
    e = jnp.mean(jnp.abs(img[:, None, :] - img[None, :, :]), axis=-1)   # (B, B)

    # --- GAT-style attention with edge features + linear head ---
    wbig = gnn_ref[0:F, 0:HBW]                             # (64, 32): [Wh | Wh@a_dst | 0]
    wsrcT = gnn_ref[ROW_WSRC:ROW_WSRC + HEADS, 0:F]        # (3, 64):  rows = a_src_h . Wh_h
    wo_e = gnn_ref[0:HBW, HBW:HBW + HEADS * NUM_CLASSES]   # (32, 15): block-diag Wo
    ce = gnn_ref[ROW_CE:ROW_CE + 1, 0:HEADS]               # (1, 3): a_edge_h . W_edge_h
    bo = gnn_ref[ROW_BO:ROW_BO + 1, 0:NUM_CLASSES]         # (1, 5): bo + b_gat @ Wo

    hb = jnp.dot(feats, wbig, preferred_element_type=jnp.float32)      # (B, 32)
    # source terms already oriented (HEADS, B); shares its only dependency
    # (feats) with the hb matmul, so both pushes pipeline on the MXU.
    colT = jnp.einsum('hf,bf->hb', wsrcT, feats,
                      preferred_element_type=jnp.float32)               # (HEADS, B)
    rdst = hb[:, HEADS * D:HEADS * D + HEADS]                           # (B, HEADS)
    # Z_h = (W_h x) @ Wo_h for all heads in one pass; independent of softmax.
    z = jnp.dot(hb, wo_e, preferred_element_type=jnp.float32)           # (B, HEADS*NC)

    out = jnp.zeros((B, NUM_CLASSES), jnp.float32)
    for h in range(HEADS):                                 # static unroll over heads
        # PyG GATConv: att_dst pairs with target i (rows), att_src with source j
        # (cols); edge term is e_ij * (a_edge_h . W_edge_h).
        logit = rdst[:, h:h + 1] + colT[h:h + 1, :] + e * ce[:, h:h + 1]   # (B, B)
        logit = jnp.where(logit > 0, logit, NEG_SLOPE * logit)             # LeakyReLU(0.2)
        mx = jnp.max(logit, axis=1, keepdims=True)
        p = jnp.exp(logit - mx)
        alpha = p / jnp.sum(p, axis=1, keepdims=True)       # exact softmax (f32)
        out = out + jnp.dot(alpha, z[:, h * NUM_CLASSES:(h + 1) * NUM_CLASSES],
                            preferred_element_type=jnp.float32)            # (B, NC)

    # NOTE: NUM_CLASSES=5 -> masked vst; pad Wo/bo lanes if reused at larger sizes.
    o_ref[...] = out + bo


# ---------------------------------------------------------------------------
# Glue (jitted): im2col + parameter folds + slab packing, then one pallas_call
# ---------------------------------------------------------------------------
def _im2col(images):
    xp = jnp.pad(images, ((0, 0), (0, 0), (1, 1), (1, 1)))
    cols = []
    for dh in range(KH):
        for dw in range(KW):
            cols.append(xp[:, :, dh:dh + IMG, dw:dw + IMG])
    p = jnp.stack(cols, axis=2)                            # (B, C, KH*KW, H, W)
    return p.transpose(0, 3, 4, 1, 2).reshape(BHW, CK)     # (B*H*W, C*KH*KW)


def _pack_operands(images, params):
    # Slab 1 (bf16): lane-dense patches + conv weight -> one contiguous DMA.
    # TODO(synk): im2col stays as a tiny XLA prologue; building 3x3 patches
    #   in-kernel would need unaligned lane slices/relayouts of the 4-D image.
    patches = _im2col(images).astype(jnp.bfloat16)          # (512, 27)
    stem = jnp.zeros((BHW + PK, PK), jnp.bfloat16)
    stem = stem.at[:BHW, :CK].set(patches)
    stem = stem.at[BHW:BHW + CK, :F].set(params['Wc'].astype(jnp.bfloat16))

    # Slab 2 (f32): every small parameter, pre-folded.
    Whr = params['Wh'].reshape(F, HEADS, D)
    w_dst = jnp.einsum('fhd,hd->fh', Whr, params['a_dst'])  # (F, HEADS)
    w_srcT = jnp.einsum('fhd,hd->hf', Whr, params['a_src'])  # (HEADS, F)
    # lin_edge fold: valid because PyG GATConv's lin_edge has bias=False.
    ce = jnp.sum(params['W_edge'].reshape(HEADS, D) * params['a_edge'], axis=-1)
    # GATConv output bias (concat=True) folded through the linear head.
    bo_eff = params['bo'] + params['b_gat'] @ params['Wo']   # (1, NUM_CLASSES)
    wo_ext = jnp.zeros((HBW, HEADS * NUM_CLASSES), jnp.float32)
    for h in range(HEADS):
        wo_ext = wo_ext.at[h * D:(h + 1) * D,
                           h * NUM_CLASSES:(h + 1) * NUM_CLASSES].set(
            params['Wo'][h * D:(h + 1) * D, :])

    gnn = jnp.zeros((GNN_ROWS, GNN_COLS), jnp.float32)
    gnn = gnn.at[:F, :HEADS * D].set(params['Wh'])
    gnn = gnn.at[:F, HEADS * D:HEADS * D + HEADS].set(w_dst)
    gnn = gnn.at[:HBW, HBW:HBW + HEADS * NUM_CLASSES].set(wo_ext)
    gnn = gnn.at[ROW_BC, :F].set(params['bc'][0])
    gnn = gnn.at[ROW_LNG, :F].set(params['ln_g'][0])
    gnn = gnn.at[ROW_LNB, :F].set(params['ln_b'][0])
    gnn = gnn.at[ROW_CE, :HEADS].set(ce)
    gnn = gnn.at[ROW_BO, :NUM_CLASSES].set(bo_eff[0])
    gnn = gnn.at[ROW_WSRC:ROW_WSRC + HEADS, :F].set(w_srcT)

    # Slab 3 (f32): flat images for get_edge_attr.
    img_flat = images.reshape(B, CHW).astype(jnp.float32)
    return stem, img_flat, gnn


@jax.jit
def convnext_gnn_forward(images, params):
    stem, img_flat, gnn = _pack_operands(images, params)
    vmem = lambda: pl.BlockSpec(memory_space=pltpu.MemorySpace.VMEM)
    # Grid-less call: whole operands live in VMEM, kernel body runs once.
    # (At B=2 this is single-TC work; add a "parallel" batch grid axis before
    #  scaling batches so v7x's second TensorCore is used.)
    return pl.pallas_call(
        _fused_kernel,
        out_shape=jax.ShapeDtypeStruct((B, NUM_CLASSES), jnp.float32),
        in_specs=[vmem(), vmem(), vmem()],
        out_specs=vmem(),
        compiler_params=pltpu.CompilerParams(),
    )(stem, img_flat, gnn)


def init_params(key):
    ks = jax.random.split(key, 9)
    return {
        'Wc':     jax.random.normal(ks[0], (CK, F), jnp.float32) * 0.1,
        'bc':     jnp.zeros((1, F), jnp.float32),
        'ln_g':   jnp.ones((1, F), jnp.float32),
        'ln_b':   jnp.zeros((1, F), jnp.float32),
        'Wh':     jax.random.normal(ks[1], (F, HEADS * D), jnp.float32) * 0.1,
        'a_src':  jax.random.normal(ks[2], (HEADS, D), jnp.float32) * 0.1,
        'a_dst':  jax.random.normal(ks[3], (HEADS, D), jnp.float32) * 0.1,
        'W_edge': jax.random.normal(ks[4], (1, HEADS * D), jnp.float32) * 0.1,
        'a_edge': jax.random.normal(ks[5], (HEADS, D), jnp.float32) * 0.1,
        'b_gat':  jax.random.normal(ks[7], (1, HEADS * D), jnp.float32) * 0.1,
        'Wo':     jax.random.normal(ks[6], (HEADS * D, NUM_CLASSES), jnp.float32) * 0.1,
        'bo':     jnp.zeros((1, NUM_CLASSES), jnp.float32),
    }


if __name__ == "__main__":
    key = jax.random.PRNGKey(0)
    pkey, xkey = jax.random.split(key)
    params = init_params(pkey)
    images = jax.random.normal(xkey, (B, C, IMG, IMG), jnp.float32)   # NCHW like PyTorch

    logits = convnext_gnn_forward(images, params)
    logits = jax.block_until_ready(logits)
    assert logits.shape == (B, NUM_CLASSES)
    assert bool(jnp.all(jnp.isfinite(logits)))
    print("KERNEL_OK")
</pallas_src>

<mosaic_0001>
module attributes {stable_mosaic.version = 11 : i64} {
  func.func @_fused_kernel(%arg0: memref<640x128xbf16, #tpu.memory_space<vmem>>, %arg1: memref<2x768xf32, #tpu.memory_space<vmem>>, %arg2: memref<80x128xf32, #tpu.memory_space<vmem>>, %arg3: memref<2x5xf32, #tpu.memory_space<vmem>>) attributes {dimension_semantics = [], scalar_prefetch = 0 : i64, scratch_operands = 0 : i64, tpu.core_type = #tpu.core_type<tc>} {
    %c0 = arith.constant 0 : index
    %c0_0 = arith.constant 0 : index
    %0 = vector.load %arg0[%c0, %c0_0] : memref<640x128xbf16, #tpu.memory_space<vmem>>, vector<512x128xbf16>
    %c512 = arith.constant 512 : index
    %c0_1 = arith.constant 0 : index
    %1 = vector.load %arg0[%c512, %c0_1] : memref<640x128xbf16, #tpu.memory_space<vmem>>, vector<128x64xbf16>
    %cst = arith.constant dense<0.000000e+00> : vector<512x64xf32>
    %2 = tpu.matmul %0, %1, %cst {dimension_numbers = #tpu.dot_dimension_numbers<[1], [0], [0], [1], [0, 0, 1, 1], [], []>} : vector<512x128xbf16>, vector<128x64xbf16>, vector<512x64xf32> -> vector<512x64xf32>
    %c64 = arith.constant 64 : index
    %c0_2 = arith.constant 0 : index
    %3 = vector.load %arg2[%c64, %c0_2] : memref<80x128xf32, #tpu.memory_space<vmem>>, vector<1x64xf32>
    %4 = vector.broadcast %3 : vector<1x64xf32> to vector<512x64xf32>
    %5 = arith.addf %2, %4 : vector<512x64xf32>
    %cst_3 = arith.constant 0.000000e+00 : f32
    %6 = vector.broadcast %cst_3 : f32 to vector<512x64xf32>
    %7 = arith.maximumf %5, %6 : vector<512x64xf32>
    %8 = vector.shape_cast %7 : vector<512x64xf32> to vector<2x256x64xf32>
    %cst_4 = arith.constant dense<0.000000e+00> : vector<2x64xf32>
    %9 = vector.multi_reduction <add>, %8, %cst_4 [1] : vector<2x256x64xf32> to vector<2x64xf32>
    %cst_5 = arith.constant 2.560000e+02 : f32
    %10 = vector.broadcast %cst_5 : f32 to vector<2x64xf32>
    %11 = arith.divf %9, %10 : vector<2x64xf32>
    %c65 = arith.constant 65 : index
    %c0_6 = arith.constant 0 : index
    %12 = vector.load %arg2[%c65, %c0_6] : memref<80x128xf32, #tpu.memory_space<vmem>>, vector<1x64xf32>
    %c66 = arith.constant 66 : index
    %c0_7 = arith.constant 0 : index
    %13 = vector.load %arg2[%c66, %c0_7] : memref<80x128xf32, #tpu.memory_space<vmem>>, vector<1x64xf32>
    %cst_8 = arith.constant dense<0.000000e+00> : vector<2xf32>
    %14 = vector.multi_reduction <add>, %11, %cst_8 [1] : vector<2x64xf32> to vector<2xf32>
    %15 = vector.shape_cast %14 : vector<2xf32> to vector<2x1xf32>
    %cst_9 = arith.constant 6.400000e+01 : f32
    %16 = vector.broadcast %cst_9 : f32 to vector<2x1xf32>
    %17 = arith.divf %15, %16 : vector<2x1xf32>
    %18 = vector.broadcast %17 : vector<2x1xf32> to vector<2x64xf32>
    %19 = arith.subf %11, %18 : vector<2x64xf32>
    %20 = arith.mulf %19, %19 : vector<2x64xf32>
    %cst_10 = arith.constant dense<0.000000e+00> : vector<2xf32>
    %21 = vector.multi_reduction <add>, %20, %cst_10 [1] : vector<2x64xf32> to vector<2xf32>
    %22 = vector.shape_cast %21 : vector<2xf32> to vector<2x1xf32>
    %cst_11 = arith.constant 6.400000e+01 : f32
    %23 = vector.broadcast %cst_11 : f32 to vector<2x1xf32>
    %24 = arith.divf %22, %23 : vector<2x1xf32>
    %25 = vector.broadcast %17 : vector<2x1xf32> to vector<2x64xf32>
    %26 = arith.subf %11, %25 : vector<2x64xf32>
    %cst_12 = arith.constant 9.99999997E-7 : f32
    %27 = vector.broadcast %cst_12 : f32 to vector<2x1xf32>
    %28 = arith.addf %24, %27 : vector<2x1xf32>
    %29 = math.rsqrt %28 : vector<2x1xf32>
    %30 = vector.broadcast %29 : vector<2x1xf32> to vector<2x64xf32>
    %31 = arith.mulf %26, %30 : vector<2x64xf32>
    %32 = vector.broadcast %12 : vector<1x64xf32> to vector<2x64xf32>
    %33 = arith.mulf %31, %32 : vector<2x64xf32>
    %34 = vector.broadcast %13 : vector<1x64xf32> to vector<2x64xf32>
    %35 = arith.addf %33, %34 : vector<2x64xf32>
    %c0_13 = arith.constant 0 : index
    %c0_14 = arith.constant 0 : index
    %36 = vector.load %arg1[%c0_13, %c0_14] : memref<2x768xf32, #tpu.memory_space<vmem>>, vector<2x768xf32>
    %37 = vector.shape_cast %36 : vector<2x768xf32> to vector<2x1x768xf32>
    %38 = vector.shape_cast %36 : vector<2x768xf32> to vector<1x2x768xf32>
    %39 = vector.broadcast %37 : vector<2x1x768xf32> to vector<2x2x768xf32>
    %40 = vector.broadcast %38 : vector<1x2x768xf32> to vector<2x2x768xf32>
    %41 = arith.subf %39, %40 : vector<2x2x768xf32>
    %42 = math.absf %41 : vector<2x2x768xf32>
    %cst_15 = arith.constant dense<0.000000e+00> : vector<2x2xf32>
    %43 = vector.multi_reduction <add>, %42, %cst_15 [2] : vector<2x2x768xf32> to vector<2x2xf32>
    %cst_16 = arith.constant 7.680000e+02 : f32
    %44 = vector.broadcast %cst_16 : f32 to vector<2x2xf32>
    %45 = arith.divf %43, %44 : vector<2x2xf32>
    %c0_17 = arith.constant 0 : index
    %c0_18 = arith.constant 0 : index
    %46 = vector.load %arg2[%c0_17, %c0_18] : memref<80x128xf32, #tpu.memory_space<vmem>>, vector<64x32xf32>
    %c72 = arith.constant 72 : index
    %c0_19 = arith.constant 0 : index
    %47 = vector.load %arg2[%c72, %c0_19] : memref<80x128xf32, #tpu.memory_space<vmem>>, vector<3x64xf32>
    %c0_20 = arith.constant 0 : index
    %c32 = arith.constant 32 : index
    %48 = vector.load %arg2[%c0_20, %c32] : memref<80x128xf32, #tpu.memory_space<vmem>>, vector<32x15xf32>
    %c67 = arith.constant 67 : index
    %c0_21 = arith.constant 0 : index
    %49 = vector.load %arg2[%c67, %c0_21] : memref<80x128xf32, #tpu.memory_space<vmem>>, vector<1x3xf32>
    %c68 = arith.constant 68 : index
    %c0_22 = arith.constant 0 : index
    %50 = vector.load %arg2[%c68, %c0_22] : memref<80x128xf32, #tpu.memory_space<vmem>>, vector<1x5xf32>
    %cst_23 = arith.constant dense<0.000000e+00> : vector<2x32xf32>
    %51 = tpu.matmul %35, %46, %cst_23 {dimension_numbers = #tpu.dot_dimension_numbers<[1], [0], [0], [1], [0, 0, 1, 1], [], []>} : vector<2x64xf32>, vector<64x32xf32>, vector<2x32xf32> -> vector<2x32xf32>
    "tpu.trace_start"() <{level = 10 : i32, message = "hf,bf->hb"}> : () -> ()
    %cst_24 = arith.constant dense<0.000000e+00> : vector<3x2xf32>
    %52 = tpu.matmul %47, %35, %cst_24 {dimension_numbers = #tpu.dot_dimension_numbers<[1], [1], [0], [0], [0, 0, 1, 0], [], []>} : vector<3x64xf32>, vector<2x64xf32>, vector<3x2xf32> -> vector<3x2xf32>
    "tpu.trace_stop"() : () -> ()
    %53 = vector.extract_strided_slice %51 {offsets = [0, 24], sizes = [2, 3], strides = [1, 1]} : vector<2x32xf32> to vector<2x3xf32>
    %cst_25 = arith.constant dense<0.000000e+00> : vector<2x15xf32>
    %54 = tpu.matmul %51, %48, %cst_25 {dimension_numbers = #tpu.dot_dimension_numbers<[1], [0], [0], [1], [0, 0, 1, 1], [], []>} : vector<2x32xf32>, vector<32x15xf32>, vector<2x15xf32> -> vector<2x15xf32>
    %cst_26 = arith.constant 0.000000e+00 : f32
    %55 = vector.broadcast %cst_26 : f32 to vector<2x5xf32>
    %56 = vector.extract_strided_slice %53 {offsets = [0, 0], sizes = [2, 1], strides = [1, 1]} : vector<2x3xf32> to vector<2x1xf32>
    %57 = vector.extract_strided_slice %52 {offsets = [0, 0], sizes = [1, 2], strides = [1, 1]} : vector<3x2xf32> to vector<1x2xf32>
    %58 = vector.broadcast %56 : vector<2x1xf32> to vector<2x2xf32>
    %59 = vector.broadcast %57 : vector<1x2xf32> to vector<2x2xf32>
    %60 = arith.addf %58, %59 : vector<2x2xf32>
    %61 = vector.extract_strided_slice %49 {offsets = [0, 0], sizes = [1, 1], strides = [1, 1]} : vector<1x3xf32> to vector<1x1xf32>
    %62 = vector.broadcast %61 : vector<1x1xf32> to vector<2x2xf32>
    %63 = arith.mulf %45, %62 : vector<2x2xf32>
    %64 = arith.addf %60, %63 : vector<2x2xf32>
    %cst_27 = arith.constant 0.000000e+00 : f32
    %65 = vector.broadcast %cst_27 : f32 to vector<2x2xf32>
    %66 = arith.cmpf ogt, %64, %65 : vector<2x2xf32>
    %cst_28 = arith.constant 2.000000e-01 : f32
    %67 = vector.broadcast %cst_28 : f32 to vector<2x2xf32>
    %68 = arith.mulf %67, %64 : vector<2x2xf32>
    %69 = arith.select %66, %64, %68 : vector<2x2xi1>, vector<2x2xf32>
    %cst_29 = arith.constant dense<0xFF800000> : vector<2xf32>
    %70 = vector.multi_reduction <maximumf>, %69, %cst_29 [1] : vector<2x2xf32> to vector<2xf32>
    %71 = vector.shape_cast %70 : vector<2xf32> to vector<2x1xf32>
    %72 = vector.broadcast %71 : vector<2x1xf32> to vector<2x2xf32>
    %73 = arith.subf %69, %72 : vector<2x2xf32>
    %74 = math.exp %73 : vector<2x2xf32>
    %cst_30 = arith.constant dense<0.000000e+00> : vector<2xf32>
    %75 = vector.multi_reduction <add>, %74, %cst_30 [1] : vector<2x2xf32> to vector<2xf32>
    %76 = vector.shape_cast %75 : vector<2xf32> to vector<2x1xf32>
    %77 = vector.broadcast %76 : vector<2x1xf32> to vector<2x2xf32>
    %78 = arith.divf %74, %77 : vector<2x2xf32>
    %79 = vector.extract_strided_slice %54 {offsets = [0, 0], sizes = [2, 5], strides = [1, 1]} : vector<2x15xf32> to vector<2x5xf32>
    %cst_31 = arith.constant dense<0.000000e+00> : vector<2x5xf32>
    %80 = tpu.matmul %78, %79, %cst_31 {dimension_numbers = #tpu.dot_dimension_numbers<[1], [0], [0], [1], [0, 0, 1, 1], [], []>} : vector<2x2xf32>, vector<2x5xf32>, vector<2x5xf32> -> vector<2x5xf32>
    %81 = arith.addf %55, %80 : vector<2x5xf32>
    %82 = vector.extract_strided_slice %53 {offsets = [0, 1], sizes = [2, 1], strides = [1, 1]} : vector<2x3xf32> to vector<2x1xf32>
    %83 = vector.extract_strided_slice %52 {offsets = [1, 0], sizes = [1, 2], strides = [1, 1]} : vector<3x2xf32> to vector<1x2xf32>
    %84 = vector.broadcast %82 : vector<2x1xf32> to vector<2x2xf32>
    %85 = vector.broadcast %83 : vector<1x2xf32> to vector<2x2xf32>
    %86 = arith.addf %84, %85 : vector<2x2xf32>
    %87 = vector.extract_strided_slice %49 {offsets = [0, 1], sizes = [1, 1], strides = [1, 1]} : vector<1x3xf32> to vector<1x1xf32>
    %88 = vector.broadcast %87 : vector<1x1xf32> to vector<2x2xf32>
    %89 = arith.mulf %45, %88 : vector<2x2xf32>
    %90 = arith.addf %86, %89 : vector<2x2xf32>
    %cst_32 = arith.constant 0.000000e+00 : f32
    %91 = vector.broadcast %cst_32 : f32 to vector<2x2xf32>
    %92 = arith.cmpf ogt, %90, %91 : vector<2x2xf32>
    %cst_33 = arith.constant 2.000000e-01 : f32
    %93 = vector.broadcast %cst_33 : f32 to vector<2x2xf32>
    %94 = arith.mulf %93, %90 : vector<2x2xf32>
    %95 = arith.select %92, %90, %94 : vector<2x2xi1>, vector<2x2xf32>
    %cst_34 = arith.constant dense<0xFF800000> : vector<2xf32>
    %96 = vector.multi_reduction <maximumf>, %95, %cst_34 [1] : vector<2x2xf32> to vector<2xf32>
    %97 = vector.shape_cast %96 : vector<2xf32> to vector<2x1xf32>
    %98 = vector.broadcast %97 : vector<2x1xf32> to vector<2x2xf32>
    %99 = arith.subf %95, %98 : vector<2x2xf32>
    %100 = math.exp %99 : vector<2x2xf32>
    %cst_35 = arith.constant dense<0.000000e+00> : vector<2xf32>
    %101 = vector.multi_reduction <add>, %100, %cst_35 [1] : vector<2x2xf32> to vector<2xf32>
    %102 = vector.shape_cast %101 : vector<2xf32> to vector<2x1xf32>
    %103 = vector.broadcast %102 : vector<2x1xf32> to vector<2x2xf32>
    %104 = arith.divf %100, %103 : vector<2x2xf32>
    %105 = vector.extract_strided_slice %54 {offsets = [0, 5], sizes = [2, 5], strides = [1, 1]} : vector<2x15xf32> to vector<2x5xf32>
    %cst_36 = arith.constant dense<0.000000e+00> : vector<2x5xf32>
    %106 = tpu.matmul %104, %105, %cst_36 {dimension_numbers = #tpu.dot_dimension_numbers<[1], [0], [0], [1], [0, 0, 1, 1], [], []>} : vector<2x2xf32>, vector<2x5xf32>, vector<2x5xf32> -> vector<2x5xf32>
    %107 = arith.addf %81, %106 : vector<2x5xf32>
    %108 = vector.extract_strided_slice %53 {offsets = [0, 2], sizes = [2, 1], strides = [1, 1]} : vector<2x3xf32> to vector<2x1xf32>
    %109 = vector.extract_strided_slice %52 {offsets = [2, 0], sizes = [1, 2], strides = [1, 1]} : vector<3x2xf32> to vector<1x2xf32>
    %110 = vector.broadcast %108 : vector<2x1xf32> to vector<2x2xf32>
    %111 = vector.broadcast %109 : vector<1x2xf32> to vector<2x2xf32>
    %112 = arith.addf %110, %111 : vector<2x2xf32>
    %113 = vector.extract_strided_slice %49 {offsets = [0, 2], sizes = [1, 1], strides = [1, 1]} : vector<1x3xf32> to vector<1x1xf32>
    %114 = vector.broadcast %113 : vector<1x1xf32> to vector<2x2xf32>
    %115 = arith.mulf %45, %114 : vector<2x2xf32>
    %116 = arith.addf %112, %115 : vector<2x2xf32>
    %cst_37 = arith.constant 0.000000e+00 : f32
    %117 = vector.broadcast %cst_37 : f32 to vector<2x2xf32>
    %118 = arith.cmpf ogt, %116, %117 : vector<2x2xf32>
    %cst_38 = arith.constant 2.000000e-01 : f32
    %119 = vector.broadcast %cst_38 : f32 to vector<2x2xf32>
    %120 = arith.mulf %119, %116 : vector<2x2xf32>
    %121 = arith.select %118, %116, %120 : vector<2x2xi1>, vector<2x2xf32>
    %cst_39 = arith.constant dense<0xFF800000> : vector<2xf32>
    %122 = vector.multi_reduction <maximumf>, %121, %cst_39 [1] : vector<2x2xf32> to vector<2xf32>
    %123 = vector.shape_cast %122 : vector<2xf32> to vector<2x1xf32>
    %124 = vector.broadcast %123 : vector<2x1xf32> to vector<2x2xf32>
    %125 = arith.subf %121, %124 : vector<2x2xf32>
    %126 = math.exp %125 : vector<2x2xf32>
    %cst_40 = arith.constant dense<0.000000e+00> : vector<2xf32>
    %127 = vector.multi_reduction <add>, %126, %cst_40 [1] : vector<2x2xf32> to vector<2xf32>
    %128 = vector.shape_cast %127 : vector<2xf32> to vector<2x1xf32>
    %129 = vector.broadcast %128 : vector<2x1xf32> to vector<2x2xf32>
    %130 = arith.divf %126, %129 : vector<2x2xf32>
    %131 = vector.extract_strided_slice %54 {offsets = [0, 10], sizes = [2, 5], strides = [1, 1]} : vector<2x15xf32> to vector<2x5xf32>
    %cst_41 = arith.constant dense<0.000000e+00> : vector<2x5xf32>
    %132 = tpu.matmul %130, %131, %cst_41 {dimension_numbers = #tpu.dot_dimension_numbers<[1], [0], [0], [1], [0, 0, 1, 1], [], []>} : vector<2x2xf32>, vector<2x5xf32>, vector<2x5xf32> -> vector<2x5xf32>
    %133 = arith.addf %107, %132 : vector<2x5xf32>
    %134 = vector.broadcast %50 : vector<1x5xf32> to vector<2x5xf32>
    %135 = arith.addf %133, %134 : vector<2x5xf32>
    %c0_42 = arith.constant 0 : index
    %c0_43 = arith.constant 0 : index
    %136 = vector.load %arg3[%c0_42, %c0_43] : memref<2x5xf32, #tpu.memory_space<vmem>>, vector<2x5xf32>
    tpu.vector_store %arg3[%c0_42, %c0_43], %135 {strides = array<i32>} : memref<2x5xf32, #tpu.memory_space<vmem>>, vector<2x5xf32>,
    return
  }
}

</mosaic_0001>

<llo_original>
// kernel: convnext_gnn_forward.1
$region0: #{convnext_gnn_forward.1}
  #allocation0 [shape = 'u32[]', space=smem, size = 0x4, offset = 0x4, fixed_abs, tag = 'smem constant byte address 0x4 - core index']
  #allocation1 [shape = 'u32[144,128]{1,0:T(1,128)}', space=vmem, size = 0x12000, scoped, tag = 'internal scratch']
  %s0 = inlined_call_operand.vmem [shape: bf16[640,128], index: 0, kind: input, shape index: {}]
  %s1 = inlined_call_operand.vmem [shape: f32[2,768], index: 1, kind: input, shape index: {}]
  %s2 = inlined_call_operand.vmem [shape: f32[80,128], index: 2, kind: input, shape index: {}]
  %s3 = inlined_call_operand.hbm [shape: f32[2,5], index: 3, kind: output, shape index: {}]
  %s4 = sld [smem:[#allocation0]]
  $region22: #{convnext_gnn_forward.1} parent=0
    _
  %s6 = ssub.s32 1, %s4
  %s7 = scalar_select 0, %s6, %s4
  $region1: #{convnext_gnn_forward.1} parent=0
    #allocation2 [shape = 'u8[1024]{0}', space=vmem, size = 0x400, scoped, tag = 'output window, operand 0, single buffered']
    #allocation3 [shape = 's32[1]{0}', space=sflag, size = 0x4, scoped, tag = 'scoped memory for convnext_gnn_forward.1']
    %8 = vsyncpa [#allocation3], 0
    // Predicated region
    $region2: #{convnext_gnn_forward.1} parent=1 // pred_check
      _
    $region3: #{convnext_gnn_forward.1} parent=1 // pred_check_branch
      %10 = sbr.rel (0) target = $region5
    $region4: #{convnext_gnn_forward.1} parent=1 // pred_region
      _
    $region5: #{convnext_gnn_forward.1} parent=1 // pred_fallthru
      _
    // Predicated region
    $region6: #{convnext_gnn_forward.1} parent=1 // pred_check
      _
    $region7: #{convnext_gnn_forward.1} parent=1 // pred_check_branch
      %12 = sbr.rel (0) target = $region9
    $region8: #{convnext_gnn_forward.1} parent=1 // pred_region
      _
    $region9: #{convnext_gnn_forward.1} parent=1 // pred_fallthru
      _
    // Predicated region
    $region10: #{convnext_gnn_forward.1} parent=1 // pred_check
      _
    $region11: #{convnext_gnn_forward.1} parent=1 // pred_check_branch
      %14 = sbr.rel (0) target = $region13
    $region12: #{convnext_gnn_forward.1} parent=1 // pred_region
      _
    $region13: #{convnext_gnn_forward.1} parent=1 // pred_fallthru
      _
    %v16 = vld [vmem:[%s0] sm:$0xf]
    %v17 = vld [vmem:[%s0 + $0x4] sm:$0xf]
    %v18 = vld [vmem:[%s0 + $0x8] sm:$0xf]
    %v19 = vld [vmem:[%s0 + $0xc] sm:$0xf]
    %v20 = vld [vmem:[%s0 + $0x10] sm:$0xf]
    %v21 = vld [vmem:[%s0 + $0x14] sm:$0xf]
    %v22 = vld [vmem:[%s0 + $0x18] sm:$0xf]
    %v23 = vld [vmem:[%s0 + $0x1c] sm:$0xf]
    %v24 = vld [vmem:[%s0 + $0x20] sm:$0xf]
    %v25 = vld [vmem:[%s0 + $0x24] sm:$0xf]
    %v26 = vld [vmem:[%s0 + $0x28] sm:$0xf]
    %v27 = vld [vmem:[%s0 + $0x2c] sm:$0xf]
    %v28 = vld [vmem:[%s0 + $0x30] sm:$0xf]
    %v29 = vld [vmem:[%s0 + $0x34] sm:$0xf]
    %v30 = vld [vmem:[%s0 + $0x38] sm:$0xf]
    %v31 = vld [vmem:[%s0 + $0x3c] sm:$0xf]
    %v32 = vld [vmem:[%s0 + $0x40] sm:$0xf]
    %v33 = vld [vmem:[%s0 + $0x44] sm:$0xf]
    %v34 = vld [vmem:[%s0 + $0x48] sm:$0xf]
    %v35 = vld [vmem:[%s0 + $0x4c] sm:$0xf]
    %v36 = vld [vmem:[%s0 + $0x50] sm:$0xf]
    %v37 = vld [vmem:[%s0 + $0x54] sm:$0xf]
    %v38 = vld [vmem:[%s0 + $0x58] sm:$0xf]
    %v39 = vld [vmem:[%s0 + $0x5c] sm:$0xf]
    %v40 = vld [vmem:[%s0 + $0x60] sm:$0xf]
    %v41 = vld [vmem:[%s0 + $0x64] sm:$0xf]
    %v42 = vld [vmem:[%s0 + $0x68] sm:$0xf]
    %v43 = vld [vmem:[%s0 + $0x6c] sm:$0xf]
    %v44 = vld [vmem:[%s0 + $0x70] sm:$0xf]
    %v45 = vld [vmem:[%s0 + $0x74] sm:$0xf]
    %v46 = vld [vmem:[%s0 + $0x78] sm:$0xf]
    %v47 = vld [vmem:[%s0 + $0x7c] sm:$0xf]
    %v48 = vld [vmem:[%s0 + $0x80] sm:$0xf]
    %v49 = vld [vmem:[%s0 + $0x84] sm:$0xf]
    %v50 = vld [vmem:[%s0 + $0x88] sm:$0xf]
    %v51 = vld [vmem:[%s0 + $0x8c] sm:$0xf]
    %v52 = vld [vmem:[%s0 + $0x90] sm:$0xf]
    %v53 = vld [vmem:[%s0 + $0x94] sm:$0xf]
    %v54 = vld [vmem:[%s0 + $0x98] sm:$0xf]
    %v55 = vld [vmem:[%s0 + $0x9c] sm:$0xf]
    %v56 = vld [vmem:[%s0 + $0xa0] sm:$0xf]
    %v57 = vld [vmem:[%s0 + $0xa4] sm:$0xf]
    %v58 = vld [vmem:[%s0 + $0xa8] sm:$0xf]
    %v59 = vld [vmem:[%s0 + $0xac] sm:$0xf]
    %v60 = vld [vmem:[%s0 + $0xb0] sm:$0xf]
    %v61 = vld [vmem:[%s0 + $0xb4] sm:$0xf]
    %v62 = vld [vmem:[%s0 + $0xb8] sm:$0xf]
    %v63 = vld [vmem:[%s0 + $0xbc] sm:$0xf]
    %v64 = vld [vmem:[%s0 + $0xc0] sm:$0xf]
    %v65 = vld [vmem:[%s0 + $0xc4] sm:$0xf]
    %v66 = vld [vmem:[%s0 + $0xc8] sm:$0xf]
    %v67 = vld [vmem:[%s0 + $0xcc] sm:$0xf]
    %v68 = vld [vmem:[%s0 + $0xd0] sm:$0xf]
    %v69 = vld [vmem:[%s0 + $0xd4] sm:$0xf]
    %v70 = vld [vmem:[%s0 + $0xd8] sm:$0xf]
    %v71 = vld [vmem:[%s0 + $0xdc] sm:$0xf]
    %v72 = vld [vmem:[%s0 + $0xe0] sm:$0xf]
    %v73 = vld [vmem:[%s0 + $0xe4] sm:$0xf]
    %v74 = vld [vmem:[%s0 + $0xe8] sm:$0xf]
    %v75 = vld [vmem:[%s0 + $0xec] sm:$0xf]
    %v76 = vld [vmem:[%s0 + $0xf0] sm:$0xf]
    %v77 = vld [vmem:[%s0 + $0xf4] sm:$0xf]
    %v78 = vld [vmem:[%s0 + $0xf8] sm:$0xf]
    %v79 = vld [vmem:[%s0 + $0xfc] sm:$0xf]
    %v80 = vld [vmem:[%s0 + $0x100] sm:$0xf]
    %v81 = vld [vmem:[%s0 + $0x104] sm:$0xf]
    %v82 = vld [vmem:[%s0 + $0x108] sm:$0xf]
    %v83 = vld [vmem:[%s0 + $0x10c] sm:$0xf]
    %v84 = vld [vmem:[%s0 + $0x110] sm:$0xf]
    %v85 = vld [vmem:[%s0 + $0x114] sm:$0xf]
    %v86 = vld [vmem:[%s0 + $0x118] sm:$0xf]
    %v87 = vld [vmem:[%s0 + $0x11c] sm:$0xf]
    %v88 = vld [vmem:[%s0 + $0x120] sm:$0xf]
    %v89 = vld [vmem:[%s0 + $0x124] sm:$0xf]
    %v90 = vld [vmem:[%s0 + $0x128] sm:$0xf]
    %v91 = vld [vmem:[%s0 + $0x12c] sm:$0xf]
    %v92 = vld [vmem:[%s0 + $0x130] sm:$0xf]
    %v93 = vld [vmem:[%s0 + $0x134] sm:$0xf]
    %v94 = vld [vmem:[%s0 + $0x138] sm:$0xf]
    %v95 = vld [vmem:[%s0 + $0x13c] sm:$0xf]
    %v96 = vld [vmem:[%s2 + $0x40] sm:$0x1]
    %v97 = vlaneseq
    %v98 = vshrl.u32 %v97, 7
    %v99 = vsub.s32 0, %v98
    %v100 = vrot.slane %v96, %v99
    %v165 = vunpack.c.l.b16 %v16
    %v166 = vunpack.c.l.b16 %v17
    %v167 = vunpack.c.l.b16 %v18
    %v168 = vunpack.c.l.b16 %v19
    %v169 = vunpack.c.l.b16 %v20
    %v170 = vunpack.c.l.b16 %v21
    %v171 = vunpack.c.l.b16 %v22
    %v172 = vunpack.c.l.b16 %v23
    %v173 = vunpack.c.l.b16 %v24
    %v174 = vunpack.c.l.b16 %v25
    %v175 = vunpack.c.l.b16 %v26
    %v176 = vunpack.c.l.b16 %v27
    %v177 = vunpack.c.l.b16 %v28
    %v178 = vunpack.c.l.b16 %v29
    %v179 = vunpack.c.l.b16 %v30
    %v180 = vunpack.c.l.b16 %v31
    %v181 = vunpack.c.l.b16 %v32
    %v182 = vunpack.c.l.b16 %v33
    %v183 = vunpack.c.l.b16 %v34
    %v184 = vunpack.c.l.b16 %v35
    %v185 = vunpack.c.l.b16 %v36
    %v186 = vunpack.c.l.b16 %v37
    %v187 = vunpack.c.l.b16 %v38
    %v188 = vunpack.c.l.b16 %v39
    %v189 = vunpack.c.l.b16 %v40
    %v190 = vunpack.c.l.b16 %v41
    %v191 = vunpack.c.l.b16 %v42
    %v192 = vunpack.c.l.b16 %v43
    %v193 = vunpack.c.l.b16 %v44
    %v194 = vunpack.c.l.b16 %v45
    %v195 = vunpack.c.l.b16 %v46
    %v196 = vunpack.c.l.b16 %v47
    %v197 = vunpack.c.l.b16 %v48
    %v198 = vunpack.c.l.b16 %v49
    %v199 = vunpack.c.l.b16 %v50
    %v200 = vunpack.c.l.b16 %v51
    %v201 = vunpack.c.l.b16 %v52
    %v202 = vunpack.c.l.b16 %v53
    %v203 = vunpack.c.l.b16 %v54
    %v204 = vunpack.c.l.b16 %v55
    %v205 = vunpack.c.l.b16 %v56
    %v206 = vunpack.c.l.b16 %v57
    %v207 = vunpack.c.l.b16 %v58
    %v208 = vunpack.c.l.b16 %v59
    %v209 = vunpack.c.l.b16 %v60
    %v210 = vunpack.c.l.b16 %v61
    %v211 = vunpack.c.l.b16 %v62
    %v212 = vunpack.c.l.b16 %v63
    %v213 = vunpack.c.l.b16 %v64
    %v214 = vunpack.c.l.b16 %v65
    %v215 = vunpack.c.l.b16 %v66
    %v216 = vunpack.c.l.b16 %v67
    %v217 = vunpack.c.l.b16 %v68
    %v218 = vunpack.c.l.b16 %v69
    %v219 = vunpack.c.l.b16 %v70
    %v220 = vunpack.c.l.b16 %v71
    %v221 = vunpack.c.l.b16 %v72
    %v222 = vunpack.c.l.b16 %v73
    %v223 = vunpack.c.l.b16 %v74
    %v224 = vunpack.c.l.b16 %v75
    %v225 = vunpack.c.l.b16 %v76
    %v226 = vunpack.c.l.b16 %v77
    %v227 = vunpack.c.l.b16 %v78
    %v228 = vunpack.c.l.b16 %v79
    %v229 = vpack.c.b16 %v166, %v165
    %v230 = vpack.c.b16 %v168, %v167
    %v231 = vpack.c.b16 %v170, %v169
    %v232 = vpack.c.b16 %v172, %v171
    %v233 = vpack.c.b16 %v174, %v173
    %v234 = vpack.c.b16 %v176, %v175
    %v235 = vpack.c.b16 %v178, %v177
    %v236 = vpack.c.b16 %v180, %v179
    %v237 = vpack.c.b16 %v182, %v181
    %v238 = vpack.c.b16 %v184, %v183
    %v239 = vpack.c.b16 %v186, %v185
    %v240 = vpack.c.b16 %v188, %v187
    %v241 = vpack.c.b16 %v190, %v189
    %v242 = vpack.c.b16 %v192, %v191
    %v243 = vpack.c.b16 %v194, %v193
    %v244 = vpack.c.b16 %v196, %v195
    %v245 = vpack.c.b16 %v198, %v197
    %v246 = vpack.c.b16 %v200, %v199
    %v247 = vpack.c.b16 %v202, %v201
    %v248 = vpack.c.b16 %v204, %v203
    %v249 = vpack.c.b16 %v206, %v205
    %v250 = vpack.c.b16 %v208, %v207
    %v251 = vpack.c.b16 %v210, %v209
    %v252 = vpack.c.b16 %v212, %v211
    %v253 = vpack.c.b16 %v214, %v213
    %v254 = vpack.c.b16 %v216, %v215
    %v255 = vpack.c.b16 %v218, %v217
    %v256 = vpack.c.b16 %v220, %v219
    %v257 = vpack.c.b16 %v222, %v221
    %v258 = vpack.c.b16 %v224, %v223
    %v259 = vpack.c.b16 %v226, %v225
    %v260 = vpack.c.b16 %v228, %v227
    %v309 = vunpack.c.l.b16 %v80
    %v310 = vunpack.c.l.b16 %v81
    %v311 = vunpack.c.l.b16 %v82
    %v312 = vunpack.c.l.b16 %v83
    %v313 = vunpack.c.l.b16 %v84
    %v314 = vunpack.c.l.b16 %v85
    %v315 = vunpack.c.l.b16 %v86
    %v316 = vunpack.c.l.b16 %v87
    %v317 = vunpack.c.l.b16 %v88
    %v318 = vunpack.c.l.b16 %v89
    %v319 = vunpack.c.l.b16 %v90
    %v320 = vunpack.c.l.b16 %v91
    %v321 = vunpack.c.l.b16 %v92
    %v322 = vunpack.c.l.b16 %v93
    %v323 = vunpack.c.l.b16 %v94
    %v324 = vunpack.c.l.b16 %v95
    %v325 = vpack.c.b16 %v310, %v309
    %v326 = vpack.c.b16 %v312, %v311
    %v327 = vpack.c.b16 %v314, %v313
    %v328 = vpack.c.b16 %v316, %v315
    %v329 = vpack.c.b16 %v318, %v317
    %v330 = vpack.c.b16 %v320, %v319
    %v331 = vpack.c.b16 %v322, %v321
    %v332 = vpack.c.b16 %v324, %v323
    %341 = vmatprep.subr.bf16.mxu0 0
    %342 = vmatpush1.bf16.msra.mxu0 %v325
    %343 = vmatprep.subr.bf16.mxu0 0
    %344 = vmatpush1.bf16.msra.mxu0 %v326
    %345 = vmatprep.subr.bf16.mxu0 0
    %346 = vmatpush1.bf16.msra.mxu0 %v327
    %347 = vmatprep.subr.bf16.mxu0 0
    %348 = vmatpush1.bf16.msra.mxu0 %v328
    %349 = vmatprep.subr.bf16.mxu0 0
    %350 = vmatpush1.bf16.msra.mxu0 %v329
    %351 = vmatprep.subr.bf16.mxu0 0
    %352 = vmatpush1.bf16.msra.mxu0 %v330
    %353 = vmatprep.subr.bf16.mxu0 0
    %354 = vmatpush1.bf16.msra.mxu0 %v331
    %355 = vmatprep.subr.bf16.mxu0 0
    %356 = vmatpush1.bf16.msra.mxu0 %v332
    %357 = vmatprep.subr.bf16.mxu0 0
    %358 = vmatpush1.bf16.msra.mxu0 0
    %359 = vmatprep.subr.bf16.mxu0 0
    %360 = vmatpush1.bf16.msra.mxu0 0
    %361 = vmatprep.subr.bf16.mxu0 0
    %362 = vmatpush1.bf16.msra.mxu0 0
    %363 = vmatprep.subr.bf16.mxu0 0
    %364 = vmatpush1.bf16.msra.mxu0 0
    %365 = vmatprep.subr.bf16.mxu0 0
    %366 = vmatpush1.bf16.msra.mxu0 0
    %367 = vmatprep.subr.bf16.mxu0 0
    %368 = vmatpush1.bf16.msra.mxu0 0
    %369 = vmatprep.subr.bf16.mxu0 0
    %370 = vmatpush1.bf16.msra.mxu0 0
    %371 = vmatprep.subr.bf16.mxu0 0
    %372 = vmatpush1.bf16.msra.mxu0 0
    %373 = vmatprep.mubr.bf16.mxu0 0
    %374 = vmatmul.mubr.bf16.gmra.mrb[0].mxu0 %v229
    %v375 = vpop.f32.mrb[0].mxu0
    %v376 = vadd.f32 %v100, %v375
    %v377 = vpop.f32.mrb[0].mxu0
    %v378 = vpop.f32.mrb[0].mxu0
    %v379 = vadd.f32 %v100, %v378
    %v380 = vpop.f32.mrb[0].mxu0
    %381 = vmatprep.mubr.bf16.mxu0 0
    %382 = vmatmul.mubr.bf16.gmra.mrb[0].mxu0 %v230
    %v383 = vpop.f32.mrb[0].mxu0
    %v384 = vadd.f32 %v100, %v383
    %v385 = vpop.f32.mrb[0].mxu0
    %v386 = vpop.f32.mrb[0].mxu0
    %v387 = vadd.f32 %v100, %v386
    %v388 = vpop.f32.mrb[0].mxu0
    %389 = vmatprep.mubr.bf16.mxu0 0
    %390 = vmatmul.mubr.bf16.gmra.mrb[0].mxu0 %v231
    %v391 = vpop.f32.mrb[0].mxu0
    %v392 = vadd.f32 %v100, %v391
    %v393 = vpop.f32.mrb[0].mxu0
    %v394 = vpop.f32.mrb[0].mxu0
    %v395 = vadd.f32 %v100, %v394
    %v396 = vpop.f32.mrb[0].mxu0
    %397 = vmatprep.mubr.bf16.mxu0 0
    %398 = vmatmul.mubr.bf16.gmra.mrb[0].mxu0 %v232
    %v399 = vpop.f32.mrb[0].mxu0
    %v400 = vadd.f32 %v100, %v399
    %v401 = vpop.f32.mrb[0].mxu0
    %v402 = vpop.f32.mrb[0].mxu0
    %v403 = vadd.f32 %v100, %v402
    %v404 = vpop.f32.mrb[0].mxu0
    %405 = vmatprep.mubr.bf16.mxu0 0
    %406 = vmatmul.mubr.bf16.gmra.mrb[0].mxu0 %v233
    %v407 = vpop.f32.mrb[0].mxu0
    %v408 = vadd.f32 %v100, %v407
    %v409 = vpop.f32.mrb[0].mxu0
    %v410 = vpop.f32.mrb[0].mxu0
    %v411 = vadd.f32 %v100, %v410
    %v412 = vpop.f32.mrb[0].mxu0
    %413 = vmatprep.mubr.bf16.mxu0 0
    %414 = vmatmul.mubr.bf16.gmra.mrb[0].mxu0 %v234
    %v415 = vpop.f32.mrb[0].mxu0
    %v416 = vadd.f32 %v100, %v415
    %v417 = vpop.f32.mrb[0].mxu0
    %v418 = vpop.f32.mrb[0].mxu0
    %v419 = vadd.f32 %v100, %v418
    %v420 = vpop.f32.mrb[0].mxu0
    %421 = vmatprep.mubr.bf16.mxu0 0
    %422 = vmatmul.mubr.bf16.gmra.mrb[0].mxu0 %v235
    %v423 = vpop.f32.mrb[0].mxu0
    %v424 = vadd.f32 %v100, %v423
    %v425 = vpop.f32.mrb[0].mxu0
    %v426 = vpop.f32.mrb[0].mxu0
    %v427 = vadd.f32 %v100, %v426
    %v428 = vpop.f32.mrb[0].mxu0
    %429 = vmatprep.mubr.bf16.mxu0 0
    %430 = vmatmul.mubr.bf16.gmra.mrb[0].mxu0 %v236
    %v431 = vpop.f32.mrb[0].mxu0
    %v432 = vadd.f32 %v100, %v431
    %v433 = vpop.f32.mrb[0].mxu0
    %v434 = vpop.f32.mrb[0].mxu0
    %v435 = vadd.f32 %v100, %v434
    %v436 = vpop.f32.mrb[0].mxu0
    %437 = vmatprep.mubr.bf16.mxu0 0
    %438 = vmatmul.mubr.bf16.gmra.mrb[0].mxu0 %v237
    %v439 = vpop.f32.mrb[0].mxu0
    %v440 = vadd.f32 %v100, %v439
    %v441 = vpop.f32.mrb[0].mxu0
    %v442 = vpop.f32.mrb[0].mxu0
    %v443 = vadd.f32 %v100, %v442
    %v444 = vpop.f32.mrb[0].mxu0
    %445 = vmatprep.mubr.bf16.mxu0 0
    %446 = vmatmul.mubr.bf16.gmra.mrb[0].mxu0 %v238
    %v447 = vpop.f32.mrb[0].mxu0
    %v448 = vadd.f32 %v100, %v447
    %v449 = vpop.f32.mrb[0].mxu0
    %v450 = vpop.f32.mrb[0].mxu0
    %v451 = vadd.f32 %v100, %v450
    %v452 = vpop.f32.mrb[0].mxu0
    %453 = vmatprep.mubr.bf16.mxu0 0
    %454 = vmatmul.mubr.bf16.gmra.mrb[0].mxu0 %v239
    %v455 = vpop.f32.mrb[0].mxu0
    %v456 = vadd.f32 %v100, %v455
    %v457 = vpop.f32.mrb[0].mxu0
    %v458 = vpop.f32.mrb[0].mxu0
    %v459 = vadd.f32 %v100, %v458
    %v460 = vpop.f32.mrb[0].mxu0
    %461 = vmatprep.mubr.bf16.mxu0 0
    %462 = vmatmul.mubr.bf16.gmra.mrb[0].mxu0 %v240
    %v463 = vpop.f32.mrb[0].mxu0
    %v464 = vadd.f32 %v100, %v463
    %v465 = vpop.f32.mrb[0].mxu0
    %v466 = vpop.f32.mrb[0].mxu0
    %v467 = vadd.f32 %v100, %v466
    %v468 = vpop.f32.mrb[0].mxu0
    %469 = vmatprep.mubr.bf16.mxu0 0
    %470 = vmatmul.mubr.bf16.gmra.mrb[0].mxu0 %v241
    %v471 = vpop.f32.mrb[0].mxu0
    %v472 = vadd.f32 %v100, %v471
    %v473 = vpop.f32.mrb[0].mxu0
    %v474 = vpop.f32.mrb[0].mxu0
    %v475 = vadd.f32 %v100, %v474
    %v476 = vpop.f32.mrb[0].mxu0
    %477 = vmatprep.mubr.bf16.mxu0 0
    %478 = vmatmul.mubr.bf16.gmra.mrb[0].mxu0 %v242
    %v479 = vpop.f32.mrb[0].mxu0
    %v480 = vadd.f32 %v100, %v479
    %v481 = vpop.f32.mrb[0].mxu0
    %v482 = vpop.f32.mrb[0].mxu0
    %v483 = vadd.f32 %v100, %v482
    %v484 = vpop.f32.mrb[0].mxu0
    %485 = vmatprep.mubr.bf16.mxu0 0
    %486 = vmatmul.mubr.bf16.gmra.mrb[0].mxu0 %v243
    %v487 = vpop.f32.mrb[0].mxu0
    %v488 = vadd.f32 %v100, %v487
    %v489 = vpop.f32.mrb[0].mxu0
    %v490 = vpop.f32.mrb[0].mxu0
    %v491 = vadd.f32 %v100, %v490
    %v492 = vpop.f32.mrb[0].mxu0
    %493 = vmatprep.mubr.bf16.mxu0 0
    %494 = vmatmul.mubr.bf16.gmra.mrb[0].mxu0 %v244
    %v495 = vpop.f32.mrb[0].mxu0
    %v496 = vadd.f32 %v100, %v495
    %v497 = vpop.f32.mrb[0].mxu0
    %v498 = vpop.f32.mrb[0].mxu0
    %v499 = vadd.f32 %v100, %v498
    %v500 = vpop.f32.mrb[0].mxu0
    %501 = vmatprep.mubr.bf16.mxu0 0
    %502 = vmatmul.mubr.bf16.gmra.mrb[0].mxu0 %v245
    %v503 = vpop.f32.mrb[0].mxu0
    %v504 = vadd.f32 %v100, %v503
    %v505 = vpop.f32.mrb[0].mxu0
    %v506 = vpop.f32.mrb[0].mxu0
    %v507 = vadd.f32 %v100, %v506
    %v508 = vpop.f32.mrb[0].mxu0
    %509 = vmatprep.mubr.bf16.mxu0 0
    %510 = vmatmul.mubr.bf16.gmra.mrb[0].mxu0 %v246
    %v511 = vpop.f32.mrb[0].mxu0
    %v512 = vadd.f32 %v100, %v511
    %v513 = vpop.f32.mrb[0].mxu0
    %v514 = vpop.f32.mrb[0].mxu0
    %v515 = vadd.f32 %v100, %v514
    %v516 = vpop.f32.mrb[0].mxu0
    %517 = vmatprep.mubr.bf16.mxu0 0
    %518 = vmatmul.mubr.bf16.gmra.mrb[0].mxu0 %v247
    %v519 = vpop.f32.mrb[0].mxu0
    %v520 = vadd.f32 %v100, %v519
    %v521 = vpop.f32.mrb[0].mxu0
    %v522 = vpop.f32.mrb[0].mxu0
    %v523 = vadd.f32 %v100, %v522
    %v524 = vpop.f32.mrb[0].mxu0
    %525 = vmatprep.mubr.bf16.mxu0 0
    %526 = vmatmul.mubr.bf16.gmra.mrb[0].mxu0 %v248
    %v527 = vpop.f32.mrb[0].mxu0
    %v528 = vadd.f32 %v100, %v527
    %v529 = vpop.f32.mrb[0].mxu0
    %v530 = vpop.f32.mrb[0].mxu0
    %v531 = vadd.f32 %v100, %v530
    %v532 = vpop.f32.mrb[0].mxu0
    %533 = vmatprep.mubr.bf16.mxu0 0
    %534 = vmatmul.mubr.bf16.gmra.mrb[0].mxu0 %v249
    %v535 = vpop.f32.mrb[0].mxu0
    %v536 = vadd.f32 %v100, %v535
    %v537 = vpop.f32.mrb[0].mxu0
    %v538 = vpop.f32.mrb[0].mxu0
    %v539 = vadd.f32 %v100, %v538
    %v540 = vpop.f32.mrb[0].mxu0
    %541 = vmatprep.mubr.bf16.mxu0 0
    %542 = vmatmul.mubr.bf16.gmra.mrb[0].mxu0 %v250
    %v543 = vpop.f32.mrb[0].mxu0
    %v544 = vadd.f32 %v100, %v543
    %v545 = vpop.f32.mrb[0].mxu0
    %v546 = vpop.f32.mrb[0].mxu0
    %v547 = vadd.f32 %v100, %v546
    %v548 = vpop.f32.mrb[0].mxu0
    %549 = vmatprep.mubr.bf16.mxu0 0
    %550 = vmatmul.mubr.bf16.gmra.mrb[0].mxu0 %v251
    %v551 = vpop.f32.mrb[0].mxu0
    %v552 = vadd.f32 %v100, %v551
    %v553 = vpop.f32.mrb[0].mxu0
    %v554 = vpop.f32.mrb[0].mxu0
    %v555 = vadd.f32 %v100, %v554
    %v556 = vpop.f32.mrb[0].mxu0
    %557 = vmatprep.mubr.bf16.mxu0 0
    %558 = vmatmul.mubr.bf16.gmra.mrb[0].mxu0 %v252
    %v559 = vpop.f32.mrb[0].mxu0
    %v560 = vadd.f32 %v100, %v559
    %v561 = vpop.f32.mrb[0].mxu0
    %v562 = vpop.f32.mrb[0].mxu0
    %v563 = vadd.f32 %v100, %v562
    %v564 = vpop.f32.mrb[0].mxu0
    %565 = vmatprep.mubr.bf16.mxu0 0
    %566 = vmatmul.mubr.bf16.gmra.mrb[0].mxu0 %v253
    %v567 = vpop.f32.mrb[0].mxu0
    %v568 = vadd.f32 %v100, %v567
    %v569 = vpop.f32.mrb[0].mxu0
    %v570 = vpop.f32.mrb[0].mxu0
    %v571 = vadd.f32 %v100, %v570
    %v572 = vpop.f32.mrb[0].mxu0
    %573 = vmatprep.mubr.bf16.mxu0 0
    %574 = vmatmul.mubr.bf16.gmra.mrb[0].mxu0 %v254
    %v575 = vpop.f32.mrb[0].mxu0
    %v576 = vadd.f32 %v100, %v575
    %v577 = vpop.f32.mrb[0].mxu0
    %v578 = vpop.f32.mrb[0].mxu0
    %v579 = vadd.f32 %v100, %v578
    %v580 = vpop.f32.mrb[0].mxu0
    %581 = vmatprep.mubr.bf16.mxu0 0
    %582 = vmatmul.mubr.bf16.gmra.mrb[0].mxu0 %v255
    %v583 = vpop.f32.mrb[0].mxu0
    %v584 = vadd.f32 %v100, %v583
    %v585 = vpop.f32.mrb[0].mxu0
    %v586 = vpop.f32.mrb[0].mxu0
    %v587 = vadd.f32 %v100, %v586
    %v588 = vpop.f32.mrb[0].mxu0
    %589 = vmatprep.mubr.bf16.mxu0 0
    %590 = vmatmul.mubr.bf16.gmra.mrb[0].mxu0 %v256
    %v591 = vpop.f32.mrb[0].mxu0
    %v592 = vadd.f32 %v100, %v591
    %v593 = vpop.f32.mrb[0].mxu0
    %v594 = vpop.f32.mrb[0].mxu0
    %v595 = vadd.f32 %v100, %v594
    %v596 = vpop.f32.mrb[0].mxu0
    %597 = vmatprep.mubr.bf16.mxu0 0
    %598 = vmatmul.mubr.bf16.gmra.mrb[0].mxu0 %v257
    %v599 = vpop.f32.mrb[0].mxu0
    %v600 = vadd.f32 %v100, %v599
    %v601 = vpop.f32.mrb[0].mxu0
    %v602 = vpop.f32.mrb[0].mxu0
    %v603 = vadd.f32 %v100, %v602
    %v604 = vpop.f32.mrb[0].mxu0
    %605 = vmatprep.mubr.bf16.mxu0 0
    %606 = vmatmul.mubr.bf16.gmra.mrb[0].mxu0 %v258
    %v607 = vpop.f32.mrb[0].mxu0
    %v608 = vadd.f32 %v100, %v607
    %v609 = vpop.f32.mrb[0].mxu0
    %v610 = vpop.f32.mrb[0].mxu0
    %v611 = vadd.f32 %v100, %v610
    %v612 = vpop.f32.mrb[0].mxu0
    %613 = vmatprep.mubr.bf16.mxu0 0
    %614 = vmatmul.mubr.bf16.gmra.mrb[0].mxu0 %v259
    %v615 = vpop.f32.mrb[0].mxu0
    %v616 = vadd.f32 %v100, %v615
    %v617 = vpop.f32.mrb[0].mxu0
    %v618 = vpop.f32.mrb[0].mxu0
    %v619 = vadd.f32 %v100, %v618
    %v620 = vpop.f32.mrb[0].mxu0
    %621 = vmatprep.mubr.bf16.mxu0 0
    %622 = vmatmul.mubr.bf16.gmra.mrb[0].mxu0 %v260
    %v623 = vpop.f32.mrb[0].mxu0
    %v624 = vadd.f32 %v100, %v623
    %v625 = vpop.f32.mrb[0].mxu0
    %v626 = vpop.f32.mrb[0].mxu0
    %v627 = vadd.f32 %v100, %v626
    %v628 = vpop.f32.mrb[0].mxu0
    %629 = vdwg.mxu0
    %v630 = vmax.f32 %v376, 0.0
    %v631 = vmax.f32 %v379, 0.0
    %v632 = vmax.f32 %v384, 0.0
    %v633 = vmax.f32 %v387, 0.0
    %v634 = vmax.f32 %v392, 0.0
    %v635 = vmax.f32 %v395, 0.0
    %v636 = vmax.f32 %v400, 0.0
    %v637 = vmax.f32 %v403, 0.0
    %v638 = vmax.f32 %v408, 0.0
    %v639 = vmax.f32 %v411, 0.0
    %v640 = vmax.f32 %v416, 0.0
    %v641 = vmax.f32 %v419, 0.0
    %v642 = vmax.f32 %v424, 0.0
    %v643 = vmax.f32 %v427, 0.0
    %v644 = vmax.f32 %v432, 0.0
    %v645 = vmax.f32 %v435, 0.0
    %v646 = vmax.f32 %v440, 0.0
    %v647 = vmax.f32 %v443, 0.0
    %v648 = vmax.f32 %v448, 0.0
    %v649 = vmax.f32 %v451, 0.0
    %v650 = vmax.f32 %v456, 0.0
    %v651 = vmax.f32 %v459, 0.0
    %v652 = vmax.f32 %v464, 0.0
    %v653 = vmax.f32 %v467, 0.0
    %v654 = vmax.f32 %v472, 0.0
    %v655 = vmax.f32 %v475, 0.0
    %v656 = vmax.f32 %v480, 0.0
    %v657 = vmax.f32 %v483, 0.0
    %v658 = vmax.f32 %v488, 0.0
    %v659 = vmax.f32 %v491, 0.0
    %v660 = vmax.f32 %v496, 0.0
    %v661 = vmax.f32 %v499, 0.0
    %v662 = vmax.f32 %v504, 0.0
    %v663 = vmax.f32 %v507, 0.0
    %v664 = vmax.f32 %v512, 0.0
    %v665 = vmax.f32 %v515, 0.0
    %v666 = vmax.f32 %v520, 0.0
    %v667 = vmax.f32 %v523, 0.0
    %v668 = vmax.f32 %v528, 0.0
    %v669 = vmax.f32 %v531, 0.0
    %v670 = vmax.f32 %v536, 0.0
    %v671 = vmax.f32 %v539, 0.0
    %v672 = vmax.f32 %v544, 0.0
    %v673 = vmax.f32 %v547, 0.0
    %v674 = vmax.f32 %v552, 0.0
    %v675 = vmax.f32 %v555, 0.0
    %v676 = vmax.f32 %v560, 0.0
    %v677 = vmax.f32 %v563, 0.0
    %v678 = vmax.f32 %v568, 0.0
    %v679 = vmax.f32 %v571, 0.0
    %v680 = vmax.f32 %v576, 0.0
    %v681 = vmax.f32 %v579, 0.0
    %v682 = vmax.f32 %v584, 0.0
    %v683 = vmax.f32 %v587, 0.0
    %v684 = vmax.f32 %v592, 0.0
    %v685 = vmax.f32 %v595, 0.0
    %v686 = vmax.f32 %v600, 0.0
    %v687 = vmax.f32 %v603, 0.0
    %v688 = vmax.f32 %v608, 0.0
    %v689 = vmax.f32 %v611, 0.0
    %v690 = vmax.f32 %v616, 0.0
    %v691 = vmax.f32 %v619, 0.0
    %v692 = vmax.f32 %v624, 0.0
    %v693 = vmax.f32 %v627, 0.0
    %vm694 = vcmask 523264
    %v695 = vsel %vm694, %v630, 0.0
    %v696 = vsel %vm694, %v631, 0.0
    %v697 = vadd.f32 %v695, %v696
    %v698 = vsel %vm694, %v632, 0.0
    %v699 = vadd.f32 %v697, %v698
    %v700 = vsel %vm694, %v633, 0.0
    %v701 = vadd.f32 %v699, %v700
    %v702 = vsel %vm694, %v634, 0.0
    %v703 = vadd.f32 %v701, %v702
    %v704 = vsel %vm694, %v635, 0.0
    %v705 = vadd.f32 %v703, %v704
    %v706 = vsel %vm694, %v636, 0.0
    %v707 = vadd.f32 %v705, %v706
    %v708 = vsel %vm694, %v637, 0.0
    %v709 = vadd.f32 %v707, %v708
    %v710 = vsel %vm694, %v638, 0.0
    %v711 = vadd.f32 %v709, %v710
    %v712 = vsel %vm694, %v639, 0.0
    %v713 = vadd.f32 %v711, %v712
    %v714 = vsel %vm694, %v640, 0.0
    %v715 = vadd.f32 %v713, %v714
    %v716 = vsel %vm694, %v641, 0.0
    %v717 = vadd.f32 %v715, %v716
    %v718 = vsel %vm694, %v642, 0.0
    %v719 = vadd.f32 %v717, %v718
    %v720 = vsel %vm694, %v643, 0.0
    %v721 = vadd.f32 %v719, %v720
    %v722 = vsel %vm694, %v644, 0.0
    %v723 = vadd.f32 %v721, %v722
    %v724 = vsel %vm694, %v645, 0.0
    %v725 = vadd.f32 %v723, %v724
    %v726 = vsel %vm694, %v646, 0.0
    %v727 = vadd.f32 %v725, %v726
    %v728 = vsel %vm694, %v647, 0.0
    %v729 = vadd.f32 %v727, %v728
    %v730 = vsel %vm694, %v648, 0.0
    %v731 = vadd.f32 %v729, %v730
    %v732 = vsel %vm694, %v649, 0.0
    %v733 = vadd.f32 %v731, %v732
    %v734 = vsel %vm694, %v650, 0.0
    %v735 = vadd.f32 %v733, %v734
    %v736 = vsel %vm694, %v651, 0.0
    %v737 = vadd.f32 %v735, %v736
    %v738 = vsel %vm694, %v652, 0.0
    %v739 = vadd.f32 %v737, %v738
    %v740 = vsel %vm694, %v653, 0.0
    %v741 = vadd.f32 %v739, %v740
    %v742 = vsel %vm694, %v654, 0.0
    %v743 = vadd.f32 %v741, %v742
    %v744 = vsel %vm694, %v655, 0.0
    %v745 = vadd.f32 %v743, %v744
    %v746 = vsel %vm694, %v656, 0.0
    %v747 = vadd.f32 %v745, %v746
    %v748 = vsel %vm694, %v657, 0.0
    %v749 = vadd.f32 %v747, %v748
    %v750 = vsel %vm694, %v658, 0.0
    %v751 = vadd.f32 %v749, %v750
    %v752 = vsel %vm694, %v659, 0.0
    %v753 = vadd.f32 %v751, %v752
    %v754 = vsel %vm694, %v660, 0.0
    %v755 = vadd.f32 %v753, %v754
    %v756 = vsel %vm694, %v661, 0.0
    %v757 = vadd.f32 %v755, %v756
    %v758 = vrot.slane %v757, 4
    %v759 = vadd.f32 %v757, %v758
    %v760 = vrot.slane %v759, 2
    %v761 = vadd.f32 %v759, %v760
    %v762 = vrot.slane %v761, 1
    %v763 = vadd.f32 %v761, %v762
    %v764 = vsel %vm694, %v662, 0.0
    %v765 = vsel %vm694, %v663, 0.0
    %v766 = vadd.f32 %v764, %v765
    %v767 = vsel %vm694, %v664, 0.0
    %v768 = vadd.f32 %v766, %v767
    %v769 = vsel %vm694, %v665, 0.0
    %v770 = vadd.f32 %v768, %v769
    %v771 = vsel %vm694, %v666, 0.0
    %v772 = vadd.f32 %v770, %v771
    %v773 = vsel %vm694, %v667, 0.0
    %v774 = vadd.f32 %v772, %v773
    %v775 = vsel %vm694, %v668, 0.0
    %v776 = vadd.f32 %v774, %v775
    %v777 = vsel %vm694, %v669, 0.0
    %v778 = vadd.f32 %v776, %v777
    %v779 = vsel %vm694, %v670, 0.0
    %v780 = vadd.f32 %v778, %v779
    %v781 = vsel %vm694, %v671, 0.0
    %v782 = vadd.f32 %v780, %v781
    %v783 = vsel %vm694, %v672, 0.0
    %v784 = vadd.f32 %v782, %v783
    %v785 = vsel %vm694, %v673, 0.0
    %v786 = vadd.f32 %v784, %v785
    %v787 = vsel %vm694, %v674, 0.0
    %v788 = vadd.f32 %v786, %v787
    %v789 = vsel %vm694, %v675, 0.0
    %v790 = vadd.f32 %v788, %v789
    %v791 = vsel %vm694, %v676, 0.0
    %v792 = vadd.f32 %v790, %v791
    %v793 = vsel %vm694, %v677, 0.0
    %v794 = vadd.f32 %v792, %v793
    %v795 = vsel %vm694, %v678, 0.0
    %v796 = vadd.f32 %v794, %v795
    %v797 = vsel %vm694, %v679, 0.0
    %v798 = vadd.f32 %v796, %v797
    %v799 = vsel %vm694, %v680, 0.0
    %v800 = vadd.f32 %v798, %v799
    %v801 = vsel %vm694, %v681, 0.0
    %v802 = vadd.f32 %v800, %v801
    %v803 = vsel %vm694, %v682, 0.0
    %v804 = vadd.f32 %v802, %v803
    %v805 = vsel %vm694, %v683, 0.0
    %v806 = vadd.f32 %v804, %v805
    %v807 = vsel %vm694, %v684, 0.0
    %v808 = vadd.f32 %v806, %v807
    %v809 = vsel %vm694, %v685, 0.0
    %v810 = vadd.f32 %v808, %v809
    %v811 = vsel %vm694, %v686, 0.0
    %v812 = vadd.f32 %v810, %v811
    %v813 = vsel %vm694, %v687, 0.0
    %v814 = vadd.f32 %v812, %v813
    %v815 = vsel %vm694, %v688, 0.0
    %v816 = vadd.f32 %v814, %v815
    %v817 = vsel %vm694, %v689, 0.0
    %v818 = vadd.f32 %v816, %v817
    %v819 = vsel %vm694, %v690, 0.0
    %v820 = vadd.f32 %v818, %v819
    %v821 = vsel %vm694, %v691, 0.0
    %v822 = vadd.f32 %v820, %v821
    %v823 = vsel %vm694, %v692, 0.0
    %v824 = vadd.f32 %v822, %v823
    %v825 = vsel %vm694, %v693, 0.0
    %v826 = vadd.f32 %v824, %v825
    %v827 = vrot.slane %v826, 4
    %v828 = vadd.f32 %v826, %v827
    %v829 = vrot.slane %v828, 2
    %v830 = vadd.f32 %v828, %v829
    %v831 = vrot.slane %v830, 1
    %v832 = vadd.f32 %v830, %v831
    %v833 = vrcp.pop 256.0
    %v834 = vmul.f32 %v763, %v833
    %v835 = vmul.f32 %v832, %v833
    %v836 = vld [vmem:[%s2 + $0x41] sm:$0x1]
    %v837 = vld [vmem:[%s2 + $0x42] sm:$0x1]
    %vm840 = vcmask 1041409
    %v841 = vsel %vm840, %v835, %v834
    %vm843 = vcmask 517120
    %v844 = vsel %vm843, %v841, 0.0
    %845 = vadd.xlane.f32.xlu0 %v844
    %v846 = vpop.xlane.xlu0 %845
    %v847 = vrcp.pop 64.0
    %v848 = vmul.f32 %v846, %v847
    %v850 = vrot.slane %v848, 1
    %v853 = vsub.f32 %v834, %v848
    %v854 = vsub.f32 %v835, %v850
    %v855 = vmul.f32 %v853, %v853
    %v856 = vmul.f32 %v854, %v854
    %v859 = vrot.slane %v856, 7
    %v860 = vsel %vm840, %v859, %v855
    %v862 = vsel %vm843, %v860, 0.0
    %863 = vadd.xlane.f32.xlu0 %v862
    %v864 = vpop.xlane.xlu0 %863
    %v865 = vmul.f32 %v864, %v847
    %v866 = vadd.f32 %v865, 1e-06
    %v867 = vrsqrt.pop %v866
    %v869 = vrot.slane %v867, 1
    %v872 = vmul.f32 %v853, %v867
    %v873 = vmul.f32 %v854, %v869
    %v874 = vlaneseq
    %v875 = vshrl.u32 %v874, 7
    %v876 = vsub.s32 0, %v875
    %v877 = vrot.slane %v836, %v876
    %v878 = vmul.f32 %v872, %v877
    %v879 = vmul.f32 %v873, %v877
    %v880 = vlaneseq
    %v881 = vshrl.u32 %v880, 7
    %v882 = vsub.s32 0, %v881
    %v883 = vrot.slane %v837, %v882
    %v884 = vadd.f32 %v878, %v883
    %v885 = vadd.f32 %v879, %v883
    %v886 = vld [vmem:[%s1] sm:$0xff]
    %v887 = vld [vmem:[%s1 + $0x8] sm:$0xf]
    %v891 = vunpack.c.l.s4 1966171168
    %v892 = vunpack.c.0.s8 %v891
    %v893 = vlaneseq
    %v894 = vshrl.u32 %v893, 7
    %v895 = vsub.s32 %v892, %v894
    %v896 = vrot.slane %v886, %v895
    %v898 = vunpack.c.l.s4 1966171168
    %v899 = vunpack.c.0.s8 %v898
    %v900 = vlaneseq
    %v901 = vshrl.u32 %v900, 7
    %v902 = vsub.s32 %v899, %v901
    %v903 = vrot.slane %v887, %v902
    %v904 = vcombine.low %v896, %v903
    %v905 = vcombine.high %v896, %v903
    %v906 = vlaneseq
    %v907 = vshrl.u32 %v906, 7
    %v908 = vsub.s32 0, %v907
    %v909 = vrot.slane %v904, %v908
    %v910 = vlaneseq
    %v911 = vshrl.u32 %v910, 7
    %v912 = vsub.s32 1, %v911
    %v913 = vrot.slane %v904, %v912
    %v914 = vlaneseq
    %v915 = vshrl.u32 %v914, 7
    %v916 = vsub.s32 2, %v915
    %v917 = vrot.slane %v904, %v916
    %v918 = vlaneseq
    %v919 = vshrl.u32 %v918, 7
    %v920 = vsub.s32 3, %v919
    %v921 = vrot.slane %v904, %v920
    %v922 = vlaneseq
    %v923 = vshrl.u32 %v922, 7
    %v924 = vsub.s32 4, %v923
    %v925 = vrot.slane %v904, %v924
    %v926 = vlaneseq
    %v927 = vshrl.u32 %v926, 7
    %v928 = vsub.s32 5, %v927
    %v929 = vrot.slane %v904, %v928
    %v930 = vlaneseq
    %v931 = vshrl.u32 %v930, 7
    %v932 = vsub.s32 0, %v931
    %v933 = vrot.slane %v905, %v932
    %v934 = vlaneseq
    %v935 = vshrl.u32 %v934, 7
    %v936 = vsub.s32 1, %v935
    %v937 = vrot.slane %v905, %v936
    %v938 = vlaneseq
    %v939 = vshrl.u32 %v938, 7
    %v940 = vsub.s32 2, %v939
    %v941 = vrot.slane %v905, %v940
    %v942 = vlaneseq
    %v943 = vshrl.u32 %v942, 7
    %v944 = vsub.s32 3, %v943
    %v945 = vrot.slane %v905, %v944
    %v946 = vlaneseq
    %v947 = vshrl.u32 %v946, 7
    %v948 = vsub.s32 4, %v947
    %v949 = vrot.slane %v905, %v948
    %v950 = vlaneseq
    %v951 = vshrl.u32 %v950, 7
    %v952 = vsub.s32 5, %v951
    %v953 = vrot.slane %v905, %v952
    %v966 = vcombine.high %v886, %v886
    %v968 = vunpack.c.l.s4 1983009808
    %v969 = vunpack.c.0.s8 %v968
    %v970 = vlaneseq
    %v971 = vshrl.u32 %v970, 7
    %v972 = vsub.s32 %v969, %v971
    %v973 = vrot.slane %v886, %v972
    %v975 = vunpack.c.l.s4 1983009808
    %v976 = vunpack.c.0.s8 %v975
    %v977 = vlaneseq
    %v978 = vshrl.u32 %v977, 7
    %v979 = vsub.s32 %v976, %v978
    %v980 = vrot.slane %v966, %v979
    %v981 = vcombine.high %v973, %v973
    %v982 = vcombine.high %v980, %v980
    %v984 = vunpack.c.l.s4 1983009808
    %v985 = vunpack.c.0.s8 %v984
    %v986 = vlaneseq
    %v987 = vshrl.u32 %v986, 7
    %v988 = vsub.s32 %v985, %v987
    %v989 = vrot.slane %v887, %v988
    %v990 = vcombine.high %v989, %v989
    %v997 = vsub.f32 %v909, %v973
    %v998 = vsub.f32 %v913, %v981
    %v999 = vsub.f32 %v917, %v980
    %v1000 = vsub.f32 %v921, %v982
    %v1001 = vsub.f32 %v925, %v989
    %v1002 = vsub.f32 %v929, %v990
    %v1003 = vsub.f32 %v933, %v973
    %v1004 = vsub.f32 %v937, %v981
    %v1005 = vsub.f32 %v941, %v980
    %v1006 = vsub.f32 %v945, %v982
    %v1007 = vsub.f32 %v949, %v989
    %v1008 = vsub.f32 %v953, %v990
    %v1009 = vand.u32 2147483647, %v997
    %v1010 = vand.u32 2147483647, %v998
    %v1011 = vand.u32 2147483647, %v999
    %v1012 = vand.u32 2147483647, %v1000
    %v1013 = vand.u32 2147483647, %v1001
    %v1014 = vand.u32 2147483647, %v1002
    %v1015 = vand.u32 2147483647, %v1003
    %v1016 = vand.u32 2147483647, %v1004
    %v1017 = vand.u32 2147483647, %v1005
    %v1018 = vand.u32 2147483647, %v1006
    %v1019 = vand.u32 2147483647, %v1007
    %v1020 = vand.u32 2147483647, %v1008
    %vm1021 = vcmask 1041408
    %v1022 = vsel %vm1021, %v1009, 0.0
    %v1023 = vsel %vm1021, %v1010, 0.0
    %v1024 = vadd.f32 %v1022, %v1023
    %v1025 = vsel %vm1021, %v1011, 0.0
    %v1026 = vadd.f32 %v1024, %v1025
    %v1027 = vsel %vm1021, %v1012, 0.0
    %v1028 = vadd.f32 %v1026, %v1027
    %v1029 = vsel %vm1021, %v1013, 0.0
    %v1030 = vadd.f32 %v1028, %v1029
    %v1031 = vsel %vm1021, %v1014, 0.0
    %v1032 = vadd.f32 %v1030, %v1031
    %1033 = vadd.xlane.f32.xlu0 %v1032
    %v1034 = vpop.xlane.xlu0 %1033
    %v1035 = vsel %vm1021, %v1015, 0.0
    %v1036 = vsel %vm1021, %v1016, 0.0
    %v1037 = vadd.f32 %v1035, %v1036
    %v1038 = vsel %vm1021, %v1017, 0.0
    %v1039 = vadd.f32 %v1037, %v1038
    %v1040 = vsel %vm1021, %v1018, 0.0
    %v1041 = vadd.f32 %v1039, %v1040
    %v1042 = vsel %vm1021, %v1019, 0.0
    %v1043 = vadd.f32 %v1041, %v1042
    %v1044 = vsel %vm1021, %v1020, 0.0
    %v1045 = vadd.f32 %v1043, %v1044
    %1046 = vadd.xlane.f32.xlu0 %v1045
    %v1047 = vpop.xlane.xlu0 %1046
    %v1048 = vrcp.pop 768.0
    %v1049 = vmul.f32 %v1034, %v1048
    %v1050 = vmul.f32 %v1047, %v1048
    %v1051 = vld [vmem:[%s2] sm:$0xff]
    %v1052 = vld [vmem:[%s2 + $0x8] sm:$0xff]
    %v1053 = vld [vmem:[%s2 + $0x10] sm:$0xff]
    %v1054 = vld [vmem:[%s2 + $0x18] sm:$0xff]
    %v1055 = vld [vmem:[%s2 + $0x20] sm:$0xff]
    %v1056 = vld [vmem:[%s2 + $0x28] sm:$0xff]
    %v1057 = vld [vmem:[%s2 + $0x30] sm:$0xff]
    %v1058 = vld [vmem:[%s2 + $0x38] sm:$0xff]
    %v1059 = vld [vmem:[%s2 + $0x48] sm:$0x7]
    %v1060 = vld [vmem:[%s2 + $0x43] sm:$0x1]
    %v1061 = vld [vmem:[%s2 + $0x44] sm:$0x1]
    %v1064 = vrot.slane %v885, 7
    %v1065 = vsel %vm840, %v1064, %v884
    %v1066 = vsel %vm694, %v1065, 0
    %1068 = vmatprep.subr.mxu0 0.0
    %1069 = vmatpush1.msra.mxu0 %v1051
    %1070 = vmatprep.subr.mxu0 0.0
    %1071 = vmatpush1.msra.mxu0 %v1052
    %1072 = vmatprep.subr.mxu0 0.0
    %1073 = vmatpush1.msra.mxu0 %v1053
    %1074 = vmatprep.subr.mxu0 0.0
    %1075 = vmatpush1.msra.mxu0 %v1054
    %1076 = vmatprep.subr.mxu0 0.0
    %1077 = vmatpush1.msra.mxu0 %v1055
    %1078 = vmatprep.subr.mxu0 0.0
    %1079 = vmatpush1.msra.mxu0 %v1056
    %1080 = vmatprep.subr.mxu0 0.0
    %1081 = vmatpush1.msra.mxu0 %v1057
    %1082 = vmatprep.subr.mxu0 0.0
    %1083 = vmatpush1.msra.mxu0 %v1058
    %1084 = vmatprep.subr.mxu0 0.0
    %1085 = vmatpush1.msra.mxu0 0.0
    %1086 = vmatprep.subr.mxu0 0.0
    %1087 = vmatpush1.msra.mxu0 0.0
    %1088 = vmatprep.subr.mxu0 0.0
    %1089 = vmatpush1.msra.mxu0 0.0
    %1090 = vmatprep.subr.mxu0 0.0
    %1091 = vmatpush1.msra.mxu0 0.0
    %1092 = vmatprep.subr.mxu0 0.0
    %1093 = vmatpush1.msra.mxu0 0.0
    %1094 = vmatprep.subr.mxu0 0.0
    %1095 = vmatpush1.msra.mxu0 0.0
    %1096 = vmatprep.subr.mxu0 0.0
    %1097 = vmatpush1.msra.mxu0 0.0
    %1098 = vmatprep.subr.mxu0 0.0
    %1099 = vmatpush1.msra.mxu0 0.0
    %1100 = vmatprep.subr.mxu0 0.0
    %1101 = vmatpush1.msra.mxu0 0.0
    %1102 = vmatprep.subr.mxu0 0.0
    %1103 = vmatpush1.msra.mxu0 0.0
    %1104 = vmatprep.subr.mxu0 0.0
    %1105 = vmatpush1.msra.mxu0 0.0
    %1106 = vmatprep.subr.mxu0 0.0
    %1107 = vmatpush1.msra.mxu0 0.0
    %1108 = vmatprep.subr.mxu0 0.0
    %1109 = vmatpush1.msra.mxu0 0.0
    %1110 = vmatprep.subr.mxu0 0.0
    %1111 = vmatpush1.msra.mxu0 0.0
    %1112 = vmatprep.subr.mxu0 0.0
    %1113 = vmatpush1.msra.mxu0 0.0
    %1114 = vmatprep.subr.mxu0 0.0
    %1115 = vmatpush1.msra.mxu0 0.0
    %1116 = vmatprep.subr.mxu0 0.0
    %1117 = vmatpush1.msra.mxu0 0.0
    %1118 = vmatprep.subr.mxu0 0.0
    %1119 = vmatpush1.msra.mxu0 0.0
    %1120 = vmatprep.subr.mxu0 0.0
    %1121 = vmatpush1.msra.mxu0 0.0
    %1122 = vmatprep.subr.mxu0 0.0
    %1123 = vmatpush1.msra.mxu0 0.0
    %1124 = vmatprep.subr.mxu0 0.0
    %1125 = vmatpush1.msra.mxu0 0.0
    %1126 = vmatprep.subr.mxu0 0.0
    %1127 = vmatpush1.msra.mxu0 0.0
    %1128 = vmatprep.subr.mxu0 0.0
    %1129 = vmatpush1.msra.mxu0 0.0
    %1130 = vmatprep.subr.mxu0 0.0
    %1131 = vmatpush1.msra.mxu0 0.0
    %1132 = vmatprep.mubr.f32.mxu0 0.0
    %1133 = vmatmul.mubr.f32.gmra.mrb[0].mxu0 %v1066
    %v1134 = vpop.f32.mrb[0].mxu0
    %v1135 = vadd.f32 0.0, %v1134
    %v1136 = vpop.f32.mrb[0].mxu0
    %1137 = vdwg.mxu0
    %v1139 = vsel %vm694, %v1059, 0
    %1141 = vmatprep.subr.mxu0 0.0
    %1142 = vmatpush1.xpose.msra.mxu0 %v1066
    %1143 = vmatprep.subr.mxu0 0.0
    %1144 = vmatpush1.xpose.msra.mxu0 0.0
    %1145 = vmatprep.subr.mxu0 0.0
    %1146 = vmatpush1.xpose.msra.mxu0 0.0
    %1147 = vmatprep.subr.mxu0 0.0
    %1148 = vmatpush1.xpose.msra.mxu0 0.0
    %1149 = vmatprep.subr.mxu0 0.0
    %1150 = vmatpush1.xpose.msra.mxu0 0.0
    %1151 = vmatprep.subr.mxu0 0.0
    %1152 = vmatpush1.xpose.msra.mxu0 0.0
    %1153 = vmatprep.subr.mxu0 0.0
    %1154 = vmatpush1.xpose.msra.mxu0 0.0
    %1155 = vmatprep.subr.mxu0 0.0
    %1156 = vmatpush1.xpose.msra.mxu0 0.0
    %1157 = vmatprep.subr.mxu0 0.0
    %1158 = vmatpush1.xpose.msra.mxu0 0.0
    %1159 = vmatprep.subr.mxu0 0.0
    %1160 = vmatpush1.xpose.msra.mxu0 0.0
    %1161 = vmatprep.subr.mxu0 0.0
    %1162 = vmatpush1.xpose.msra.mxu0 0.0
    %1163 = vmatprep.subr.mxu0 0.0
    %1164 = vmatpush1.xpose.msra.mxu0 0.0
    %1165 = vmatprep.subr.mxu0 0.0
    %1166 = vmatpush1.xpose.msra.mxu0 0.0
    %1167 = vmatprep.subr.mxu0 0.0
    %1168 = vmatpush1.xpose.msra.mxu0 0.0
    %1169 = vmatprep.subr.mxu0 0.0
    %1170 = vmatpush1.xpose.msra.mxu0 0.0
    %1171 = vmatprep.subr.mxu0 0.0
    %1172 = vmatpush1.xpose.msra.mxu0 0.0
    %1173 = vmatprep.subr.mxu0 0.0
    %1174 = vmatpush1.xpose.msra.mxu0 0.0
    %1175 = vmatprep.subr.mxu0 0.0
    %1176 = vmatpush1.xpose.msra.mxu0 0.0
    %1177 = vmatprep.subr.mxu0 0.0
    %1178 = vmatpush1.xpose.msra.mxu0 0.0
    %1179 = vmatprep.subr.mxu0 0.0
    %1180 = vmatpush1.xpose.msra.mxu0 0.0
    %1181 = vmatprep.subr.mxu0 0.0
    %1182 = vmatpush1.xpose.msra.mxu0 0.0
    %1183 = vmatprep.subr.mxu0 0.0
    %1184 = vmatpush1.xpose.msra.mxu0 0.0
    %1185 = vmatprep.subr.mxu0 0.0
    %1186 = vmatpush1.xpose.msra.mxu0 0.0
    %1187 = vmatprep.subr.mxu0 0.0
    %1188 = vmatpush1.xpose.msra.mxu0 0.0
    %1189 = vmatprep.subr.mxu0 0.0
    %1190 = vmatpush1.xpose.msra.mxu0 0.0
    %1191 = vmatprep.subr.mxu0 0.0
    %1192 = vmatpush1.xpose.msra.mxu0 0.0
    %1193 = vmatprep.subr.mxu0 0.0
    %1194 = vmatpush1.xpose.msra.mxu0 0.0
    %1195 = vmatprep.subr.mxu0 0.0
    %1196 = vmatpush1.xpose.msra.mxu0 0.0
    %1197 = vmatprep.subr.mxu0 0.0
    %1198 = vmatpush1.xpose.msra.mxu0 0.0
    %1199 = vmatprep.subr.mxu0 0.0
    %1200 = vmatpush1.xpose.msra.mxu0 0.0
    %1201 = vmatprep.subr.mxu0 0.0
    %1202 = vmatpush1.xpose.msra.mxu0 0.0
    %1203 = vmatprep.subr.mxu0 0.0
    %1204 = vmatpush1.xpose.msra.mxu0 0.0
    %1205 = vmatprep.mubr.f32.mxu0 0.0
    %1206 = vmatmul.mubr.f32.gmra.mrb[0].mxu0 %v1139
    %v1207 = vpop.f32.mrb[0].mxu0
    %v1208 = vadd.f32 0.0, %v1207
    %v1209 = vpop.f32.mrb[0].mxu0
    %1210 = vdwg.mxu0
    %1215 = vrot.lane.b32.xlu0 %v1051, 96
    %v1216 = vpop.permute.xlu0 %1215
    %1217 = vrot.lane.b32.xlu0 %v1052, 96
    %v1218 = vpop.permute.xlu0 %1217
    %1219 = vrot.lane.b32.xlu0 %v1053, 96
    %v1220 = vpop.permute.xlu0 %1219
    %1221 = vrot.lane.b32.xlu0 %v1054, 96
    %v1222 = vpop.permute.xlu0 %1221
    %vm1227 = vcmask 261120
    %v1229 = vsel %vm1227, %v1135, 0
    %1231 = vmatprep.subr.mxu0 0.0
    %1232 = vmatpush1.msra.mxu0 %v1216
    %1233 = vmatprep.subr.mxu0 0.0
    %1234 = vmatpush1.msra.mxu0 %v1218
    %1235 = vmatprep.subr.mxu0 0.0
    %1236 = vmatpush1.msra.mxu0 %v1220
    %1237 = vmatprep.subr.mxu0 0.0
    %1238 = vmatpush1.msra.mxu0 %v1222
    %1239 = vmatprep.subr.mxu0 0.0
    %1240 = vmatpush1.msra.mxu0 0.0
    %1241 = vmatprep.subr.mxu0 0.0
    %1242 = vmatpush1.msra.mxu0 0.0
    %1243 = vmatprep.subr.mxu0 0.0
    %1244 = vmatpush1.msra.mxu0 0.0
    %1245 = vmatprep.subr.mxu0 0.0
    %1246 = vmatpush1.msra.mxu0 0.0
    %1247 = vmatprep.subr.mxu0 0.0
    %1248 = vmatpush1.msra.mxu0 0.0
    %1249 = vmatprep.subr.mxu0 0.0
    %1250 = vmatpush1.msra.mxu0 0.0
    %1251 = vmatprep.subr.mxu0 0.0
    %1252 = vmatpush1.msra.mxu0 0.0
    %1253 = vmatprep.subr.mxu0 0.0
    %1254 = vmatpush1.msra.mxu0 0.0
    %1255 = vmatprep.subr.mxu0 0.0
    %1256 = vmatpush1.msra.mxu0 0.0
    %1257 = vmatprep.subr.mxu0 0.0
    %1258 = vmatpush1.msra.mxu0 0.0
    %1259 = vmatprep.subr.mxu0 0.0
    %1260 = vmatpush1.msra.mxu0 0.0
    %1261 = vmatprep.subr.mxu0 0.0
    %1262 = vmatpush1.msra.mxu0 0.0
    %1263 = vmatprep.subr.mxu0 0.0
    %1264 = vmatpush1.msra.mxu0 0.0
    %1265 = vmatprep.subr.mxu0 0.0
    %1266 = vmatpush1.msra.mxu0 0.0
    %1267 = vmatprep.subr.mxu0 0.0
    %1268 = vmatpush1.msra.mxu0 0.0
    %1269 = vmatprep.subr.mxu0 0.0
    %1270 = vmatpush1.msra.mxu0 0.0
    %1271 = vmatprep.subr.mxu0 0.0
    %1272 = vmatpush1.msra.mxu0 0.0
    %1273 = vmatprep.subr.mxu0 0.0
    %1274 = vmatpush1.msra.mxu0 0.0
    %1275 = vmatprep.subr.mxu0 0.0
    %1276 = vmatpush1.msra.mxu0 0.0
    %1277 = vmatprep.subr.mxu0 0.0
    %1278 = vmatpush1.msra.mxu0 0.0
    %1279 = vmatprep.subr.mxu0 0.0
    %1280 = vmatpush1.msra.mxu0 0.0
    %1281 = vmatprep.subr.mxu0 0.0
    %1282 = vmatpush1.msra.mxu0 0.0
    %1283 = vmatprep.subr.mxu0 0.0
    %1284 = vmatpush1.msra.mxu0 0.0
    %1285 = vmatprep.subr.mxu0 0.0
    %1286 = vmatpush1.msra.mxu0 0.0
    %1287 = vmatprep.subr.mxu0 0.0
    %1288 = vmatpush1.msra.mxu0 0.0
    %1289 = vmatprep.subr.mxu0 0.0
    %1290 = vmatpush1.msra.mxu0 0.0
    %1291 = vmatprep.subr.mxu0 0.0
    %1292 = vmatpush1.msra.mxu0 0.0
    %1293 = vmatprep.subr.mxu0 0.0
    %1294 = vmatpush1.msra.mxu0 0.0
    %1295 = vmatprep.mubr.f32.mxu0 0.0
    %1296 = vmatmul.mubr.f32.gmra.mrb[0].mxu0 %v1229
    %v1297 = vpop.f32.mrb[0].mxu0
    %v1298 = vadd.f32 0.0, %v1297
    %v1299 = vpop.f32.mrb[0].mxu0
    %1300 = vdwg.mxu0
    %1301 = vset.pattern.permute.xlu0 24
    %1302 = vperm.xlu0 %1301, %v1135
    %v1303 = vpop.permute.xlu0 %1302
    %v1305 = vlaneseq
    %v1306 = vshrl.u32 %v1305, 7
    %v1307 = vsub.s32 0, %v1306
    %v1308 = vrot.slane %v1208, %v1307
    %v1309 = vadd.f32 %v1303, %v1308
    %s1311 = vtos %v1060
    %v1312 = vstv %s1311
    %v1314 = vmul.f32 %v1049, %v1312
    %v1315 = vmul.f32 %v1050, %v1312
    %v1318 = vlaneseq
    %v1319 = vand.u32 %v1318, 127
    %v1320 = vlaneseq
    %v1321 = vshrl.u32 %v1320, 7
    %v1322 = vsub.s32 %v1319, %v1321
    %v1323 = vrot.slane %v1314, %v1322
    %v1324 = vlaneseq
    %v1325 = vshrl.u32 %v1324, 7
    %v1326 = vsub.s32 %v1319, %v1325
    %v1327 = vrot.slane %v1315, %v1326
    %v1328 = vsel %vm840, %v1327, %v1323
    %v1330 = vadd.f32 %v1309, %v1328
    %vm1331 = vcmp.gt.f32.partialorder %v1330, 0.0
    %v1332 = vmul.f32 %v1330, 0.2
    %v1333 = vsel %vm1331, %v1330, %v1332
    %vm1334 = vcmask 9216
    %v1335 = vsel %vm1334, %v1333, -inf
    %1336 = vmax.xlane.f32.xlu0 %v1335
    %v1337 = vpop.xlane.xlu0 %1336
    %v1338 = vsub.f32 %v1333, %v1337
    %v1339 = vmul.f32 %v1338, 1.442695
    %v1340 = vpow.pop %v1339
    %v1341 = vsel %vm1334, %v1340, 0.0
    %1342 = vadd.xlane.f32.xlu0 %v1341
    %v1343 = vpop.xlane.xlu0 %1342
    %v1344 = vrcp.pop %v1343
    %v1345 = vmul.f32 %v1340, %v1344
    %1346 = vset.pattern.permute.xlu0 25
    %1347 = vperm.xlu0 %1346, %v1135
    %v1348 = vpop.permute.xlu0 %1347
    %v1350 = vlaneseq
    %v1351 = vshrl.u32 %v1350, 7
    %v1352 = vsub.s32 1, %v1351
    %v1353 = vrot.slane %v1208, %v1352
    %v1354 = vadd.f32 %v1348, %v1353
    %1355 = vrot.lane.b32.xlu0 %v1060, 127
    %v1356 = vpop.permute.xlu0 %1355
    %s1357 = vtos %v1356
    %v1358 = vstv %s1357
    %v1360 = vmul.f32 %v1049, %v1358
    %v1361 = vmul.f32 %v1050, %v1358
    %v1364 = vlaneseq
    %v1365 = vshrl.u32 %v1364, 7
    %v1366 = vsub.s32 %v1319, %v1365
    %v1367 = vrot.slane %v1360, %v1366
    %v1368 = vlaneseq
    %v1369 = vshrl.u32 %v1368, 7
    %v1370 = vsub.s32 %v1319, %v1369
    %v1371 = vrot.slane %v1361, %v1370
    %v1372 = vsel %vm840, %v1371, %v1367
    %v1374 = vadd.f32 %v1354, %v1372
    %vm1375 = vcmp.gt.f32.partialorder %v1374, 0.0
    %v1376 = vmul.f32 %v1374, 0.2
    %v1377 = vsel %vm1375, %v1374, %v1376
    %v1378 = vsel %vm1334, %v1377, -inf
    %1379 = vmax.xlane.f32.xlu0 %v1378
    %v1380 = vpop.xlane.xlu0 %1379
    %v1381 = vsub.f32 %v1377, %v1380
    %v1382 = vmul.f32 %v1381, 1.442695
    %v1383 = vpow.pop %v1382
    %v1384 = vsel %vm1334, %v1383, 0.0
    %1385 = vadd.xlane.f32.xlu0 %v1384
    %v1386 = vpop.xlane.xlu0 %1385
    %v1387 = vrcp.pop %v1386
    %v1388 = vmul.f32 %v1383, %v1387
    %1390 = vrot.lane.b32.xlu0 %v1298, 123
    %v1391 = vpop.permute.xlu0 %1390
    %vm1392 = vcmask 15360
    %v1394 = vsel %vm1392, %v1388, 0
    %v1396 = vsel %vm1021, %v1391, 0
    %1398 = vmatprep.subr.mxu0 0.0
    %1399 = vmatpush1.msra.mxu0 %v1396
    %1400 = vmatprep.subr.mxu0 0.0
    %1401 = vmatpush1.msra.mxu0 0.0
    %1402 = vmatprep.subr.mxu0 0.0
    %1403 = vmatpush1.msra.mxu0 0.0
    %1404 = vmatprep.subr.mxu0 0.0
    %1405 = vmatpush1.msra.mxu0 0.0
    %1406 = vmatprep.subr.mxu0 0.0
    %1407 = vmatpush1.msra.mxu0 0.0
    %1408 = vmatprep.subr.mxu0 0.0
    %1409 = vmatpush1.msra.mxu0 0.0
    %1410 = vmatprep.subr.mxu0 0.0
    %1411 = vmatpush1.msra.mxu0 0.0
    %1412 = vmatprep.subr.mxu0 0.0
    %1413 = vmatpush1.msra.mxu0 0.0
    %1414 = vmatprep.subr.mxu0 0.0
    %1415 = vmatpush1.msra.mxu0 0.0
    %1416 = vmatprep.subr.mxu0 0.0
    %1417 = vmatpush1.msra.mxu0 0.0
    %1418 = vmatprep.subr.mxu0 0.0
    %1419 = vmatpush1.msra.mxu0 0.0
    %1420 = vmatprep.subr.mxu0 0.0
    %1421 = vmatpush1.msra.mxu0 0.0
    %1422 = vmatprep.subr.mxu0 0.0
    %1423 = vmatpush1.msra.mxu0 0.0
    %1424 = vmatprep.subr.mxu0 0.0
    %1425 = vmatpush1.msra.mxu0 0.0
    %1426 = vmatprep.subr.mxu0 0.0
    %1427 = vmatpush1.msra.mxu0 0.0
    %1428 = vmatprep.subr.mxu0 0.0
    %1429 = vmatpush1.msra.mxu0 0.0
    %1430 = vmatprep.subr.mxu0 0.0
    %1431 = vmatpush1.msra.mxu0 0.0
    %1432 = vmatprep.subr.mxu0 0.0
    %1433 = vmatpush1.msra.mxu0 0.0
    %1434 = vmatprep.subr.mxu0 0.0
    %1435 = vmatpush1.msra.mxu0 0.0
    %1436 = vmatprep.subr.mxu0 0.0
    %1437 = vmatpush1.msra.mxu0 0.0
    %1438 = vmatprep.subr.mxu0 0.0
    %1439 = vmatpush1.msra.mxu0 0.0
    %1440 = vmatprep.subr.mxu0 0.0
    %1441 = vmatpush1.msra.mxu0 0.0
    %1442 = vmatprep.subr.mxu0 0.0
    %1443 = vmatpush1.msra.mxu0 0.0
    %1444 = vmatprep.subr.mxu0 0.0
    %1445 = vmatpush1.msra.mxu0 0.0
    %1446 = vmatprep.subr.mxu0 0.0
    %1447 = vmatpush1.msra.mxu0 0.0
    %1448 = vmatprep.subr.mxu0 0.0
    %1449 = vmatpush1.msra.mxu0 0.0
    %1450 = vmatprep.subr.mxu0 0.0
    %1451 = vmatpush1.msra.mxu0 0.0
    %1452 = vmatprep.subr.mxu0 0.0
    %1453 = vmatpush1.msra.mxu0 0.0
    %1454 = vmatprep.subr.mxu0 0.0
    %1455 = vmatpush1.msra.mxu0 0.0
    %1456 = vmatprep.subr.mxu0 0.0
    %1457 = vmatpush1.msra.mxu0 0.0
    %1458 = vmatprep.subr.mxu0 0.0
    %1459 = vmatpush1.msra.mxu0 0.0
    %1460 = vmatprep.subr.mxu0 0.0
    %1461 = vmatpush1.msra.mxu0 0.0
    %1462 = vmatprep.mubr.f32.mxu0 0.0
    %1463 = vmatmul.mubr.f32.gmra.mrb[0].mxu0 %v1394
    %v1464 = vpop.f32.mrb[0].mxu0
    %v1465 = vadd.f32 0.0, %v1464
    %v1466 = vpop.f32.mrb[0].mxu0
    %1467 = vdwg.mxu0
    %v1469 = vsel %vm1392, %v1345, 0
    %v1471 = vsel %vm1021, %v1298, 0
    %1473 = vmatprep.subr.mxu0 0.0
    %1474 = vmatpush1.msra.mxu0 %v1471
    %1475 = vmatprep.subr.mxu0 0.0
    %1476 = vmatpush1.msra.mxu0 0.0
    %1477 = vmatprep.subr.mxu0 0.0
    %1478 = vmatpush1.msra.mxu0 0.0
    %1479 = vmatprep.subr.mxu0 0.0
    %1480 = vmatpush1.msra.mxu0 0.0
    %1481 = vmatprep.subr.mxu0 0.0
    %1482 = vmatpush1.msra.mxu0 0.0
    %1483 = vmatprep.subr.mxu0 0.0
    %1484 = vmatpush1.msra.mxu0 0.0
    %1485 = vmatprep.subr.mxu0 0.0
    %1486 = vmatpush1.msra.mxu0 0.0
    %1487 = vmatprep.subr.mxu0 0.0
    %1488 = vmatpush1.msra.mxu0 0.0
    %1489 = vmatprep.subr.mxu0 0.0
    %1490 = vmatpush1.msra.mxu0 0.0
    %1491 = vmatprep.subr.mxu0 0.0
    %1492 = vmatpush1.msra.mxu0 0.0
    %1493 = vmatprep.subr.mxu0 0.0
    %1494 = vmatpush1.msra.mxu0 0.0
    %1495 = vmatprep.subr.mxu0 0.0
    %1496 = vmatpush1.msra.mxu0 0.0
    %1497 = vmatprep.subr.mxu0 0.0
    %1498 = vmatpush1.msra.mxu0 0.0
    %1499 = vmatprep.subr.mxu0 0.0
    %1500 = vmatpush1.msra.mxu0 0.0
    %1501 = vmatprep.subr.mxu0 0.0
    %1502 = vmatpush1.msra.mxu0 0.0
    %1503 = vmatprep.subr.mxu0 0.0
    %1504 = vmatpush1.msra.mxu0 0.0
    %1505 = vmatprep.subr.mxu0 0.0
    %1506 = vmatpush1.msra.mxu0 0.0
    %1507 = vmatprep.subr.mxu0 0.0
    %1508 = vmatpush1.msra.mxu0 0.0
    %1509 = vmatprep.subr.mxu0 0.0
    %1510 = vmatpush1.msra.mxu0 0.0
    %1511 = vmatprep.subr.mxu0 0.0
    %1512 = vmatpush1.msra.mxu0 0.0
    %1513 = vmatprep.subr.mxu0 0.0
    %1514 = vmatpush1.msra.mxu0 0.0
    %1515 = vmatprep.subr.mxu0 0.0
    %1516 = vmatpush1.msra.mxu0 0.0
    %1517 = vmatprep.subr.mxu0 0.0
    %1518 = vmatpush1.msra.mxu0 0.0
    %1519 = vmatprep.subr.mxu0 0.0
    %1520 = vmatpush1.msra.mxu0 0.0
    %1521 = vmatprep.subr.mxu0 0.0
    %1522 = vmatpush1.msra.mxu0 0.0
    %1523 = vmatprep.subr.mxu0 0.0
    %1524 = vmatpush1.msra.mxu0 0.0
    %1525 = vmatprep.subr.mxu0 0.0
    %1526 = vmatpush1.msra.mxu0 0.0
    %1527 = vmatprep.subr.mxu0 0.0
    %1528 = vmatpush1.msra.mxu0 0.0
    %1529 = vmatprep.subr.mxu0 0.0
    %1530 = vmatpush1.msra.mxu0 0.0
    %1531 = vmatprep.subr.mxu0 0.0
    %1532 = vmatpush1.msra.mxu0 0.0
    %1533 = vmatprep.subr.mxu0 0.0
    %1534 = vmatpush1.msra.mxu0 0.0
    %1535 = vmatprep.subr.mxu0 0.0
    %1536 = vmatpush1.msra.mxu0 0.0
    %1537 = vmatprep.mubr.f32.mxu0 0.0
    %1538 = vmatmul.mubr.f32.gmra.mrb[0].mxu0 %v1469
    %v1539 = vpop.f32.mrb[0].mxu0
    %v1540 = vadd.f32 %v1465, %v1539
    %v1541 = vpop.f32.mrb[0].mxu0
    %1542 = vdwg.mxu0
    %1543 = vset.pattern.permute.xlu0 26
    %1544 = vperm.xlu0 %1543, %v1135
    %v1545 = vpop.permute.xlu0 %1544
    %v1547 = vlaneseq
    %v1548 = vshrl.u32 %v1547, 7
    %v1549 = vsub.s32 2, %v1548
    %v1550 = vrot.slane %v1208, %v1549
    %v1551 = vadd.f32 %v1545, %v1550
    %1552 = vrot.lane.b32.xlu0 %v1060, 126
    %v1553 = vpop.permute.xlu0 %1552
    %s1554 = vtos %v1553
    %v1555 = vstv %s1554
    %v1557 = vmul.f32 %v1049, %v1555
    %v1558 = vmul.f32 %v1050, %v1555
    %v1561 = vlaneseq
    %v1562 = vshrl.u32 %v1561, 7
    %v1563 = vsub.s32 %v1319, %v1562
    %v1564 = vrot.slane %v1557, %v1563
    %v1565 = vlaneseq
    %v1566 = vshrl.u32 %v1565, 7
    %v1567 = vsub.s32 %v1319, %v1566
    %v1568 = vrot.slane %v1558, %v1567
    %v1569 = vsel %vm840, %v1568, %v1564
    %v1571 = vadd.f32 %v1551, %v1569
    %vm1572 = vcmp.gt.f32.partialorder %v1571, 0.0
    %v1573 = vmul.f32 %v1571, 0.2
    %v1574 = vsel %vm1572, %v1571, %v1573
    %v1575 = vsel %vm1334, %v1574, -inf
    %1576 = vmax.xlane.f32.xlu0 %v1575
    %v1577 = vpop.xlane.xlu0 %1576
    %v1578 = vsub.f32 %v1574, %v1577
    %v1579 = vmul.f32 %v1578, 1.442695
    %v1580 = vpow.pop %v1579
    %v1581 = vsel %vm1334, %v1580, 0.0
    %1582 = vadd.xlane.f32.xlu0 %v1581
    %v1583 = vpop.xlane.xlu0 %1582
    %v1584 = vrcp.pop %v1583
    %v1585 = vmul.f32 %v1580, %v1584
    %1586 = vrot.lane.b32.xlu0 %v1298, 118
    %v1587 = vpop.permute.xlu0 %1586
    %v1589 = vsel %vm1392, %v1585, 0
    %v1591 = vsel %vm1021, %v1587, 0
    %1593 = vmatprep.subr.mxu0 0.0
    %1594 = vmatpush1.msra.mxu0 %v1591
    %1595 = vmatprep.subr.mxu0 0.0
    %1596 = vmatpush1.msra.mxu0 0.0
    %1597 = vmatprep.subr.mxu0 0.0
    %1598 = vmatpush1.msra.mxu0 0.0
    %1599 = vmatprep.subr.mxu0 0.0
    %1600 = vmatpush1.msra.mxu0 0.0
    %1601 = vmatprep.subr.mxu0 0.0
    %1602 = vmatpush1.msra.mxu0 0.0
    %1603 = vmatprep.subr.mxu0 0.0
    %1604 = vmatpush1.msra.mxu0 0.0
    %1605 = vmatprep.subr.mxu0 0.0
    %1606 = vmatpush1.msra.mxu0 0.0
    %1607 = vmatprep.subr.mxu0 0.0
    %1608 = vmatpush1.msra.mxu0 0.0
    %1609 = vmatprep.subr.mxu0 0.0
    %1610 = vmatpush1.msra.mxu0 0.0
    %1611 = vmatprep.subr.mxu0 0.0
    %1612 = vmatpush1.msra.mxu0 0.0
    %1613 = vmatprep.subr.mxu0 0.0
    %1614 = vmatpush1.msra.mxu0 0.0
    %1615 = vmatprep.subr.mxu0 0.0
    %1616 = vmatpush1.msra.mxu0 0.0
    %1617 = vmatprep.subr.mxu0 0.0
    %1618 = vmatpush1.msra.mxu0 0.0
    %1619 = vmatprep.subr.mxu0 0.0
    %1620 = vmatpush1.msra.mxu0 0.0
    %1621 = vmatprep.subr.mxu0 0.0
    %1622 = vmatpush1.msra.mxu0 0.0
    %1623 = vmatprep.subr.mxu0 0.0
    %1624 = vmatpush1.msra.mxu0 0.0
    %1625 = vmatprep.subr.mxu0 0.0
    %1626 = vmatpush1.msra.mxu0 0.0
    %1627 = vmatprep.subr.mxu0 0.0
    %1628 = vmatpush1.msra.mxu0 0.0
    %1629 = vmatprep.subr.mxu0 0.0
    %1630 = vmatpush1.msra.mxu0 0.0
    %1631 = vmatprep.subr.mxu0 0.0
    %1632 = vmatpush1.msra.mxu0 0.0
    %1633 = vmatprep.subr.mxu0 0.0
    %1634 = vmatpush1.msra.mxu0 0.0
    %1635 = vmatprep.subr.mxu0 0.0
    %1636 = vmatpush1.msra.mxu0 0.0
    %1637 = vmatprep.subr.mxu0 0.0
    %1638 = vmatpush1.msra.mxu0 0.0
    %1639 = vmatprep.subr.mxu0 0.0
    %1640 = vmatpush1.msra.mxu0 0.0
    %1641 = vmatprep.subr.mxu0 0.0
    %1642 = vmatpush1.msra.mxu0 0.0
    %1643 = vmatprep.subr.mxu0 0.0
    %1644 = vmatpush1.msra.mxu0 0.0
    %1645 = vmatprep.subr.mxu0 0.0
    %1646 = vmatpush1.msra.mxu0 0.0
    %1647 = vmatprep.subr.mxu0 0.0
    %1648 = vmatpush1.msra.mxu0 0.0
    %1649 = vmatprep.subr.mxu0 0.0
    %1650 = vmatpush1.msra.mxu0 0.0
    %1651 = vmatprep.subr.mxu0 0.0
    %1652 = vmatpush1.msra.mxu0 0.0
    %1653 = vmatprep.subr.mxu0 0.0
    %1654 = vmatpush1.msra.mxu0 0.0
    %1655 = vmatprep.subr.mxu0 0.0
    %1656 = vmatpush1.msra.mxu0 0.0
    %1657 = vmatprep.mubr.f32.mxu0 0.0
    %1658 = vmatmul.mubr.f32.gmra.mrb[0].mxu0 %v1589
    %v1659 = vpop.f32.mrb[0].mxu0
    %v1660 = vadd.f32 0.0, %v1659
    %v1661 = vpop.f32.mrb[0].mxu0
    %1662 = vdwg.mxu0
    %v1663 = vadd.f32 %v1540, %v1660
    %v1664 = vlaneseq
    %v1665 = vshrl.u32 %v1664, 7
    %v1666 = vsub.s32 0, %v1665
    %v1667 = vrot.slane %v1061, %v1666
    %v1668 = vadd.f32 %v1663, %v1667
    %vm1669 = vcmask 33792
    %1670 = vst.msk [vmem:[#allocation2] sm:$0x3] %vm1669, %v1668
    // Predicated region
    $region14: #{convnext_gnn_forward.1} parent=1 // pred_check
      _
    $region15: #{convnext_gnn_forward.1} parent=1 // pred_check_branch
      %1672 = sbr.rel (0) target = $region17
    $region16: #{convnext_gnn_forward.1} parent=1 // pred_region
      %s1674 = ssub.s32 32, 32
      %1675 = vsyncadd [#allocation3], %s1674
      %s1677 = sshll.u32 [#allocation2], 4
      %s1678 = int_to_ptr.vmem [resolvable:$true] %s1677
      %1680 = dma.vmem_to_hbm [thread:$0]  %s1678, 32, %s3, [#allocation3]
    $region17: #{convnext_gnn_forward.1} parent=1 // pred_fallthru
      _
    // Predicated region
    $region18: #{convnext_gnn_forward.1} parent=1 // pred_check
      _
    $region19: #{convnext_gnn_forward.1} parent=1 // pred_check_branch
      %1682 = sbr.rel (0) target = $region21
    $region20: #{convnext_gnn_forward.1} parent=1 // pred_region
      %1683 = dma.done [#allocation3], 32
    $region21: #{convnext_gnn_forward.1} parent=1 // pred_fallthru
      _
    %1684 = vsyncpa [#allocation3], 1

</llo_original>
